<compile_context>
chip_gen: v6e
topology: v6e:2x2x1
jax: 0.10.0
libtpu: 0.0.40
codegen_flags: <defaults>
</compile_context>

<pallas_src>
import numpy as np
import jax
import jax.numpy as jnp
from jax.experimental import pallas as pl
from jax.experimental.pallas import tpu as pltpu

LANE = 128


def _round_up(x, m):
    return ((x + m - 1) // m) * m


def _pad2(m, rows, cols):
    r, c = m.shape
    return jnp.pad(m, ((0, rows - r), (0, cols - c)))


def _pick_pack_factor(num_graphs, nodes_per_graph, target=256, cap=1024):
    """Smallest divisor B of num_graphs with B*n_g >= target (fills an MXU tile on
    v6e/v7x), capped so the packed bf16 A tile stays small; falls back to the
    largest divisor with B*n_g <= cap."""
    best = 1
    for b in range(1, num_graphs + 1):
        if num_graphs % b == 0 and b * nodes_per_graph <= cap:
            best = b
            if b * nodes_per_graph >= target:
                break
    return best


def image_gcn_kernel(a_ref, xw1_ref, w2_ref, b1_ref, b2_ref,
                     wc1_ref, bc1_ref, wc2_ref, bc2_ref, out_ref):
    """One grid step == one group of B block-diagonally packed graphs.

    a_ref:   [B*n_g, B*n_g] bf16 block-diagonal normalized adjacency
    xw1_ref: [B*n_g, hp]    bf16 precomputed X @ W1 (lane-dense)
    weights: bf16 lane-padded, biases f32 lane-padded; out_ref: [B, op] f32.
    """
    bn = a_ref.shape[0]
    b_graphs = out_ref.shape[0]
    n_g = bn // b_graphs
    inv_n = 1.0 / float(n_g)                 # static nodes-per-graph (see TODO above)

    a = a_ref[...]                            # [BN, BN] bf16

    # --- GCNConv 1: relu( A @ (X W1) + b1 );  X W1 precomputed outside ----------
    h = jnp.dot(a, xw1_ref[...], preferred_element_type=jnp.float32) + b1_ref[...]
    h = jnp.maximum(h, 0.0)                   # f32 elementwise (v5e-safe)

    # --- GCNConv 2: A @ (h W2) + b2 ----------------------------------------------
    hw2 = jnp.dot(h.astype(jnp.bfloat16), w2_ref[...],
                  preferred_element_type=jnp.float32)
    h2 = jnp.dot(a, hw2.astype(jnp.bfloat16),
                 preferred_element_type=jnp.float32) + b2_ref[...]

    # --- global_mean_pool: per-graph sum over the node (sublane) axis ------------
    g = jnp.sum(h2.reshape(b_graphs, n_g, h2.shape[-1]), axis=1) * inv_n   # [B, hp]

    # --- classifier (batched, M=B): Linear -> ReLU -> Linear ---------------------
    z = jnp.dot(g.astype(jnp.bfloat16), wc1_ref[...],
                preferred_element_type=jnp.float32) + bc1_ref[...]
    z = jnp.maximum(z, 0.0)
    y = jnp.dot(z.astype(jnp.bfloat16), wc2_ref[...],
                preferred_element_type=jnp.float32) + bc2_ref[...]

    out_ref[...] = y.astype(out_ref.dtype)    # lane-dense [B, op] store


def image_gcn_forward(a_norm_b, x_b, params, out_dim):
    """a_norm_b: [G, n_g, n_g] per-graph normalized adjacency. x_b: [G, n_g, F_in]."""
    (w1, b1, w2, b2, wc1, bc1, wc2, bc2) = params
    G, n_g, _ = a_norm_b.shape
    f_in = x_b.shape[-1]
    hidden = w1.shape[1]
    chid = wc1.shape[1]

    hp = _round_up(hidden, LANE)
    cp = _round_up(chid, LANE)
    op = _round_up(out_dim, LANE)

    B = _pick_pack_factor(G, n_g)             # graphs packed per grid step
    Gb = G // B
    BN = B * n_g

    # X @ W1 hoisted out of the kernel: one big well-shaped XLA matmul (f32), then
    # cast to bf16 + lane-pad for the in-kernel A@ matmul.
    xw1 = x_b.reshape(G * n_g, f_in).astype(jnp.float32) @ w1            # [G*n_g, hidden]
    xw1 = jnp.pad(xw1, ((0, 0), (0, hp - hidden))).astype(jnp.bfloat16)
    xw1 = xw1.reshape(Gb, BN, hp)

    # Block-diagonal packing of B graphs per group (off-diagonal blocks exactly 0,
    # so per-graph independence is preserved).
    a_grp = a_norm_b.reshape(Gb, B, n_g, n_g)
    eye_b = jnp.eye(B, dtype=a_norm_b.dtype)
    a_packed = jnp.einsum('gbij,bc->gbicj', a_grp, eye_b)
    a_packed = a_packed.reshape(Gb, BN, BN).astype(jnp.bfloat16)

    # Lane-padded weights: bf16 for MXU operands (single-pass vmatmul, half the DMA),
    # f32 biases (elementwise path stays f32). Zero padding is exact; sliced off below.
    w2p = _pad2(w2, hp, hp).astype(jnp.bfloat16)
    wc1p = _pad2(wc1, hp, cp).astype(jnp.bfloat16)
    wc2p = _pad2(wc2, cp, op).astype(jnp.bfloat16)
    b1p = _pad2(b1, 1, hp).astype(jnp.float32)
    b2p = _pad2(b2, 1, hp).astype(jnp.float32)
    bc1p = _pad2(bc1, 1, cp).astype(jnp.float32)
    bc2p = _pad2(bc2, 1, op).astype(jnp.float32)

    grp_blk = lambda g: (g, 0, 0)
    whole = lambda g: (0, 0)                  # constant block index -> weights stay resident

    out3 = pl.pallas_call(
        image_gcn_kernel,
        out_shape=jax.ShapeDtypeStruct((Gb, B, op), jnp.float32),
        grid=(Gb,),
        in_specs=[
            pl.BlockSpec((None, BN, BN), grp_blk),   # packed A_hat (bf16)
            pl.BlockSpec((None, BN, hp), grp_blk),   # packed X@W1 (bf16)
            pl.BlockSpec((hp, hp), whole),           # W2  (bf16)
            pl.BlockSpec((1, hp), whole),            # b1  (f32)
            pl.BlockSpec((1, hp), whole),            # b2  (f32)
            pl.BlockSpec((hp, cp), whole),           # Wc1 (bf16)
            pl.BlockSpec((1, cp), whole),            # bc1 (f32)
            pl.BlockSpec((cp, op), whole),           # Wc2 (bf16)
            pl.BlockSpec((1, op), whole),            # bc2 (f32)
        ],
        out_specs=pl.BlockSpec((None, B, op), grp_blk),
        compiler_params=pltpu.CompilerParams(
            dimension_semantics=("parallel",),       # groups independent; shard across TCs
        ),
    )(a_packed, xw1, w2p, b1p, b2p, wc1p, bc1p, wc2p, bc2p)

    return out3.reshape(G, op)[:, :out_dim]


# ----------------------- graph construction glue (NumPy) -----------------------

def grid_edge_index(h, w):
    """4-neighbor grid-graph adjacency (0/1) for an h x w image."""
    n = h * w
    adj = np.zeros((n, n), dtype=np.float32)
    for r in range(h):
        for c in range(w):
            i = r * w + c
            for dr, dc in ((0, 1), (1, 0), (0, -1), (-1, 0)):
                rr, cc = r + dr, c + dc
                if 0 <= rr < h and 0 <= cc < w:
                    adj[i, rr * w + cc] = 1.0
    return adj


def gcn_normalized_adjacency(adj):
    """A_hat = D^-1/2 (A + I) D^-1/2 (GCNConv default normalization + self loops)."""
    a = adj + np.eye(adj.shape[0], dtype=np.float32)
    deg = a.sum(axis=1)
    d_inv_sqrt = 1.0 / np.sqrt(deg)
    return (a * d_inv_sqrt[:, None]) * d_inv_sqrt[None, :]


def init_params(key, input_dim, hidden_dim, output_dim):
    ks = jax.random.split(key, 8)

    def lin(k, fan_in, fan_out):
        bound = 1.0 / np.sqrt(fan_in)
        return jax.random.uniform(k, (fan_in, fan_out), jnp.float32, -bound, bound)

    w1 = lin(ks[0], input_dim, hidden_dim)
    b1 = jax.random.uniform(ks[1], (1, hidden_dim), jnp.float32, -0.1, 0.1)
    w2 = lin(ks[2], hidden_dim, hidden_dim)
    b2 = jax.random.uniform(ks[3], (1, hidden_dim), jnp.float32, -0.1, 0.1)
    wc1 = lin(ks[4], hidden_dim, hidden_dim // 2)
    bc1 = jax.random.uniform(ks[5], (1, hidden_dim // 2), jnp.float32, -0.1, 0.1)
    wc2 = lin(ks[6], hidden_dim // 2, output_dim)
    bc2 = jax.random.uniform(ks[7], (1, output_dim), jnp.float32, -0.1, 0.1)
    return (w1, b1, w2, b2, wc1, bc1, wc2, bc2)


def reference_forward(a_norm_b, x_b, params):
    """Pure-JAX f32 reference (per graph, matching torch semantics)."""
    (w1, b1, w2, b2, wc1, bc1, wc2, bc2) = params

    def one_graph(a, x):
        h = jnp.maximum(a @ (x @ w1) + b1, 0.0)
        h = a @ (h @ w2) + b2
        g = jnp.mean(h, axis=0, keepdims=True)
        z = jnp.maximum(g @ wc1 + bc1, 0.0)
        return (z @ wc2 + bc2)[0]

    return jax.vmap(one_graph)(a_norm_b, x_b)


if __name__ == "__main__":
    # Small synthetic setup: 8 graphs, each an 8x8 grid image graph (64 nodes),
    # 8 input features per node, hidden=32, 10 output classes.
    # Pack factor B=4 -> two grid steps, each with a 256x256 packed adjacency.
    num_graphs = 8
    img_h, img_w = 8, 8
    nodes_per_graph = img_h * img_w
    input_dim, hidden_dim, output_dim = 8, 32, 10

    single = gcn_normalized_adjacency(grid_edge_index(img_h, img_w))
    a_norm_b = jnp.asarray(np.stack([single] * num_graphs, axis=0))   # [G, n_g, n_g]

    key = jax.random.PRNGKey(0)
    k_x, k_p = jax.random.split(key)
    x_b = jax.random.normal(k_x, (num_graphs, nodes_per_graph, input_dim), jnp.float32)
    params = init_params(k_p, input_dim, hidden_dim, output_dim)

    out = image_gcn_forward(a_norm_b, x_b, params, output_dim)
    out = jax.block_until_ready(out)

    ref = reference_forward(a_norm_b, x_b, params)
    # Tolerance relaxed vs pure f32: all MXU operands are bf16 (f32 accumulation),
    # giving ~1e-3-level absolute deviations on O(0.1) logits.
    np.testing.assert_allclose(np.asarray(out), np.asarray(ref), rtol=2e-2, atol=2e-2)

    print("KERNEL_OK")
</pallas_src>

<mosaic_0001>
module attributes {stable_mosaic.version = 11 : i64} {
  func.func @image_gcn_kernel(%arg0: i32, %arg1: memref<1x256x256xbf16, #tpu.memory_space<vmem>>, %arg2: memref<1x256x128xbf16, #tpu.memory_space<vmem>>, %arg3: memref<128x128xbf16, #tpu.memory_space<vmem>>, %arg4: memref<1x128xf32, #tpu.memory_space<vmem>>, %arg5: memref<1x128xf32, #tpu.memory_space<vmem>>, %arg6: memref<128x128xbf16, #tpu.memory_space<vmem>>, %arg7: memref<1x128xf32, #tpu.memory_space<vmem>>, %arg8: memref<128x128xbf16, #tpu.memory_space<vmem>>, %arg9: memref<1x128xf32, #tpu.memory_space<vmem>>, %arg10: memref<1x4x128xf32, #tpu.memory_space<vmem>>) attributes {dimension_semantics = [#tpu.dimension_semantics<parallel>], iteration_bounds = array<i64: 2>, scalar_prefetch = 0 : i64, scratch_operands = 0 : i64, tpu.core_type = #tpu.core_type<tc>, window_params = [{transform_indices = @transform_0, window_bounds = array<i64: 1, 256, 256>}, {transform_indices = @transform_1, window_bounds = array<i64: 1, 256, 128>}, {pipeline_mode = #tpu.pipeline_mode<synchronous>, transform_indices = @transform_2, window_bounds = array<i64: 128, 128>}, {pipeline_mode = #tpu.pipeline_mode<synchronous>, transform_indices = @transform_3, window_bounds = array<i64: 1, 128>}, {pipeline_mode = #tpu.pipeline_mode<synchronous>, transform_indices = @transform_4, window_bounds = array<i64: 1, 128>}, {pipeline_mode = #tpu.pipeline_mode<synchronous>, transform_indices = @transform_5, window_bounds = array<i64: 128, 128>}, {pipeline_mode = #tpu.pipeline_mode<synchronous>, transform_indices = @transform_6, window_bounds = array<i64: 1, 128>}, {pipeline_mode = #tpu.pipeline_mode<synchronous>, transform_indices = @transform_7, window_bounds = array<i64: 128, 128>}, {pipeline_mode = #tpu.pipeline_mode<synchronous>, transform_indices = @transform_8, window_bounds = array<i64: 1, 128>}, {transform_indices = @transform_9, window_bounds = array<i64: 1, 4, 128>}]} {
    %c0 = arith.constant 0 : index
    %c0_0 = arith.constant 0 : index
    %c0_1 = arith.constant 0 : index
    %0 = vector.load %arg1[%c0, %c0_0, %c0_1] : memref<1x256x256xbf16, #tpu.memory_space<vmem>>, vector<1x256x256xbf16>
    %1 = vector.shape_cast %0 : vector<1x256x256xbf16> to vector<256x256xbf16>
    %c0_2 = arith.constant 0 : index
    %c0_3 = arith.constant 0 : index
    %c0_4 = arith.constant 0 : index
    %2 = vector.load %arg2[%c0_2, %c0_3, %c0_4] : memref<1x256x128xbf16, #tpu.memory_space<vmem>>, vector<1x256x128xbf16>
    %3 = vector.shape_cast %2 : vector<1x256x128xbf16> to vector<256x128xbf16>
    %cst = arith.constant dense<0.000000e+00> : vector<256x128xf32>
    %4 = tpu.matmul %1, %3, %cst {dimension_numbers = #tpu.dot_dimension_numbers<[1], [0], [0], [1], [0, 0, 1, 1], [], []>} : vector<256x256xbf16>, vector<256x128xbf16>, vector<256x128xf32> -> vector<256x128xf32>
    %c0_5 = arith.constant 0 : index
    %c0_6 = arith.constant 0 : index
    %5 = vector.load %arg4[%c0_5, %c0_6] : memref<1x128xf32, #tpu.memory_space<vmem>>, vector<1x128xf32>
    %6 = vector.broadcast %5 : vector<1x128xf32> to vector<256x128xf32>
    %7 = arith.addf %4, %6 : vector<256x128xf32>
    %cst_7 = arith.constant 0.000000e+00 : f32
    %8 = vector.broadcast %cst_7 : f32 to vector<256x128xf32>
    %9 = arith.maximumf %7, %8 : vector<256x128xf32>
    %10 = arith.truncf %9 : vector<256x128xf32> to vector<256x128xbf16>
    %c0_8 = arith.constant 0 : index
    %c0_9 = arith.constant 0 : index
    %11 = vector.load %arg3[%c0_8, %c0_9] : memref<128x128xbf16, #tpu.memory_space<vmem>>, vector<128x128xbf16>
    %cst_10 = arith.constant dense<0.000000e+00> : vector<256x128xf32>
    %12 = tpu.matmul %10, %11, %cst_10 {dimension_numbers = #tpu.dot_dimension_numbers<[1], [0], [0], [1], [0, 0, 1, 1], [], []>} : vector<256x128xbf16>, vector<128x128xbf16>, vector<256x128xf32> -> vector<256x128xf32>
    %13 = arith.truncf %12 : vector<256x128xf32> to vector<256x128xbf16>
    %cst_11 = arith.constant dense<0.000000e+00> : vector<256x128xf32>
    %14 = tpu.matmul %1, %13, %cst_11 {dimension_numbers = #tpu.dot_dimension_numbers<[1], [0], [0], [1], [0, 0, 1, 1], [], []>} : vector<256x256xbf16>, vector<256x128xbf16>, vector<256x128xf32> -> vector<256x128xf32>
    %c0_12 = arith.constant 0 : index
    %c0_13 = arith.constant 0 : index
    %15 = vector.load %arg5[%c0_12, %c0_13] : memref<1x128xf32, #tpu.memory_space<vmem>>, vector<1x128xf32>
    %16 = vector.broadcast %15 : vector<1x128xf32> to vector<256x128xf32>
    %17 = arith.addf %14, %16 : vector<256x128xf32>
    %18 = vector.shape_cast %17 : vector<256x128xf32> to vector<4x64x128xf32>
    %cst_14 = arith.constant dense<0.000000e+00> : vector<4x128xf32>
    %19 = vector.multi_reduction <add>, %18, %cst_14 [1] : vector<4x64x128xf32> to vector<4x128xf32>
    %cst_15 = arith.constant 1.562500e-02 : f32
    %20 = vector.broadcast %cst_15 : f32 to vector<4x128xf32>
    %21 = arith.mulf %19, %20 : vector<4x128xf32>
    %22 = arith.truncf %21 : vector<4x128xf32> to vector<4x128xbf16>
    %c0_16 = arith.constant 0 : index
    %c0_17 = arith.constant 0 : index
    %23 = vector.load %arg6[%c0_16, %c0_17] : memref<128x128xbf16, #tpu.memory_space<vmem>>, vector<128x128xbf16>
    %cst_18 = arith.constant dense<0.000000e+00> : vector<4x128xf32>
    %24 = tpu.matmul %22, %23, %cst_18 {dimension_numbers = #tpu.dot_dimension_numbers<[1], [0], [0], [1], [0, 0, 1, 1], [], []>} : vector<4x128xbf16>, vector<128x128xbf16>, vector<4x128xf32> -> vector<4x128xf32>
    %c0_19 = arith.constant 0 : index
    %c0_20 = arith.constant 0 : index
    %25 = vector.load %arg7[%c0_19, %c0_20] : memref<1x128xf32, #tpu.memory_space<vmem>>, vector<1x128xf32>
    %26 = vector.broadcast %25 : vector<1x128xf32> to vector<4x128xf32>
    %27 = arith.addf %24, %26 : vector<4x128xf32>
    %cst_21 = arith.constant 0.000000e+00 : f32
    %28 = vector.broadcast %cst_21 : f32 to vector<4x128xf32>
    %29 = arith.maximumf %27, %28 : vector<4x128xf32>
    %30 = arith.truncf %29 : vector<4x128xf32> to vector<4x128xbf16>
    %c0_22 = arith.constant 0 : index
    %c0_23 = arith.constant 0 : index
    %31 = vector.load %arg8[%c0_22, %c0_23] : memref<128x128xbf16, #tpu.memory_space<vmem>>, vector<128x128xbf16>
    %cst_24 = arith.constant dense<0.000000e+00> : vector<4x128xf32>
    %32 = tpu.matmul %30, %31, %cst_24 {dimension_numbers = #tpu.dot_dimension_numbers<[1], [0], [0], [1], [0, 0, 1, 1], [], []>} : vector<4x128xbf16>, vector<128x128xbf16>, vector<4x128xf32> -> vector<4x128xf32>
    %c0_25 = arith.constant 0 : index
    %c0_26 = arith.constant 0 : index
    %33 = vector.load %arg9[%c0_25, %c0_26] : memref<1x128xf32, #tpu.memory_space<vmem>>, vector<1x128xf32>
    %34 = vector.broadcast %33 : vector<1x128xf32> to vector<4x128xf32>
    %35 = arith.addf %32, %34 : vector<4x128xf32>
    %c0_27 = arith.constant 0 : index
    %c0_28 = arith.constant 0 : index
    %c0_29 = arith.constant 0 : index
    %36 = vector.load %arg10[%c0_27, %c0_28, %c0_29] : memref<1x4x128xf32, #tpu.memory_space<vmem>>, vector<1x4x128xf32>
    %37 = vector.shape_cast %36 : vector<1x4x128xf32> to vector<4x128xf32>
    %38 = vector.shape_cast %35 : vector<4x128xf32> to vector<1x4x128xf32>
    tpu.vector_store %arg10[%c0_27, %c0_28, %c0_29], %38 {strides = array<i32>} : memref<1x4x128xf32, #tpu.memory_space<vmem>>, vector<1x4x128xf32>,
    return
  }
  func.func @transform_0(%arg0: i32) -> (i32, i32, i32) {
    %c0_i32 = arith.constant 0 : i32
    %c0_i32_0 = arith.constant 0 : i32
    %c0_i32_1 = arith.constant 0 : i32
    return %arg0, %c0_i32, %c0_i32_0 : i32, i32, i32
  }
  func.func @transform_1(%arg0: i32) -> (i32, i32, i32) {
    %c0_i32 = arith.constant 0 : i32
    %c0_i32_0 = arith.constant 0 : i32
    %c0_i32_1 = arith.constant 0 : i32
    return %arg0, %c0_i32, %c0_i32_0 : i32, i32, i32
  }
  func.func @transform_2(%arg0: i32) -> (i32, i32) {
    %c0_i32 = arith.constant 0 : i32
    %c0_i32_0 = arith.constant 0 : i32
    %c0_i32_1 = arith.constant 0 : i32
    return %c0_i32, %c0_i32_0 : i32, i32
  }
  func.func @transform_3(%arg0: i32) -> (i32, i32) {
    %c0_i32 = arith.constant 0 : i32
    %c0_i32_0 = arith.constant 0 : i32
    %c0_i32_1 = arith.constant 0 : i32
    return %c0_i32, %c0_i32_0 : i32, i32
  }
  func.func @transform_4(%arg0: i32) -> (i32, i32) {
    %c0_i32 = arith.constant 0 : i32
    %c0_i32_0 = arith.constant 0 : i32
    %c0_i32_1 = arith.constant 0 : i32
    return %c0_i32, %c0_i32_0 : i32, i32
  }
  func.func @transform_5(%arg0: i32) -> (i32, i32) {
    %c0_i32 = arith.constant 0 : i32
    %c0_i32_0 = arith.constant 0 : i32
    %c0_i32_1 = arith.constant 0 : i32
    return %c0_i32, %c0_i32_0 : i32, i32
  }
  func.func @transform_6(%arg0: i32) -> (i32, i32) {
    %c0_i32 = arith.constant 0 : i32
    %c0_i32_0 = arith.constant 0 : i32
    %c0_i32_1 = arith.constant 0 : i32
    return %c0_i32, %c0_i32_0 : i32, i32
  }
  func.func @transform_7(%arg0: i32) -> (i32, i32) {
    %c0_i32 = arith.constant 0 : i32
    %c0_i32_0 = arith.constant 0 : i32
    %c0_i32_1 = arith.constant 0 : i32
    return %c0_i32, %c0_i32_0 : i32, i32
  }
  func.func @transform_8(%arg0: i32) -> (i32, i32) {
    %c0_i32 = arith.constant 0 : i32
    %c0_i32_0 = arith.constant 0 : i32
    %c0_i32_1 = arith.constant 0 : i32
    return %c0_i32, %c0_i32_0 : i32, i32
  }
  func.func @transform_9(%arg0: i32) -> (i32, i32, i32) {
    %c0_i32 = arith.constant 0 : i32
    %c0_i32_0 = arith.constant 0 : i32
    %c0_i32_1 = arith.constant 0 : i32
    return %arg0, %c0_i32, %c0_i32_0 : i32, i32, i32
  }
}

</mosaic_0001>

<llo_original>
// kernel: tpu_custom_call.1
$region0: #{tpu_custom_call.1}
  #allocation0 [shape = 'u32[]', space=smem, size = 0x4, offset = 0x4, fixed_abs, tag = 'smem constant byte address 0x4 - core index']
  #allocation1 [shape = 'u32[144,128]{1,0:T(1,128)}', space=vmem, size = 0x12000, scoped, tag = 'internal scratch']
  %s0 = inlined_call_operand.hbm [shape: bf16[2,256,256], index: 0, kind: input, shape index: {}]
  %s1 = inlined_call_operand.hbm [shape: bf16[2,256,128], index: 1, kind: input, shape index: {}]
  %s2 = inlined_call_operand.hbm [shape: bf16[128,128], index: 2, kind: input, shape index: {}]
  %s3 = inlined_call_operand.vmem [shape: f32[1,128], index: 3, kind: input, shape index: {}]
  %s4 = inlined_call_operand.vmem [shape: f32[1,128], index: 4, kind: input, shape index: {}]
  %s5 = inlined_call_operand.hbm [shape: bf16[128,128], index: 5, kind: input, shape index: {}]
  %s6 = inlined_call_operand.vmem [shape: f32[1,128], index: 6, kind: input, shape index: {}]
  %s7 = inlined_call_operand.hbm [shape: bf16[128,128], index: 7, kind: input, shape index: {}]
  %s8 = inlined_call_operand.vmem [shape: f32[1,128], index: 8, kind: input, shape index: {}]
  %s9 = inlined_call_operand.hbm [shape: f32[2,4,128], index: 9, kind: output, shape index: {}]
  %s10 = sld [smem:[#allocation0]]
  $region89: #{tpu_custom_call.1} parent=0
    _
  %s12 = ssub.s32 1, %s10
  %s13 = scalar_select 0, %s12, %s10
  $region1: #{tpu_custom_call.1} parent=0
    #allocation2 [shape = 'u8[262144]{0}', space=vmem, size = 0x40000, scoped, tag = 'input window, operand 0']
    #allocation3 [shape = 's32[2]{0}', space=sflag, size = 0x8, scoped, tag = 'scoped memory for tpu_custom_call.1']
    #allocation4 [shape = 's32[2]{0}', space=sflag, size = 0x8, scoped, tag = 'scoped memory for tpu_custom_call.1']
    #allocation5 [shape = 'u8[131072]{0}', space=vmem, size = 0x20000, scoped, tag = 'input window, operand 1']
    #allocation6 [shape = 's32[2]{0}', space=sflag, size = 0x8, scoped, tag = 'scoped memory for tpu_custom_call.1']
    #allocation7 [shape = 'u8[32768]{0}', space=vmem, size = 0x8000, scoped, tag = 'input window, operand 2, single buffered']
    #allocation8 [shape = 'u8[32768]{0}', space=vmem, size = 0x8000, scoped, tag = 'input window, operand 5, single buffered']
    #allocation9 [shape = 's32[1]{0}', space=sflag, size = 0x4, scoped, tag = 'scoped memory for tpu_custom_call.1']
    #allocation10 [shape = 'u8[32768]{0}', space=vmem, size = 0x8000, scoped, tag = 'input window, operand 7, single buffered']
    #allocation11 [shape = 'u8[4096]{0}', space=vmem, size = 0x1000, scoped, tag = 'output window, operand 0']
    %14 = vsyncpa [#allocation3], 0
    %s15 = scalar_lea.sflag [#allocation3], 1
    %16 = vsyncpa %s15, 0
    %17 = vsyncpa [#allocation6], 0
    %s18 = scalar_lea.sflag [#allocation6], 1
    %19 = vsyncpa %s18, 0
    %20 = vsyncpa [#allocation9], 0
    %21 = vsyncpa [#allocation4], 0
    %s22 = scalar_lea.sflag [#allocation4], 1
    %23 = vsyncpa %s22, 0
    loop: start=0, step=1, limit=4
    $region2: #{tpu_custom_call.1} parent=1 // loop_pre_header
      _
    $region3: #{tpu_custom_call.1} parent=1 // loop_header
      %s25 = sphi 0, %s29
      %p26 = scmp.ge.s32.totalorder %s25, 4
      %s35 = sphi 0, %s37
      %s38 = sphi 0, %s35
      %s39 = sphi 0, %s38
      %s55 = sphi 0, %s39
      %s61 = sphi 0, %s63
      %s64 = sphi 0, %s61
      %s65 = sphi 0, %s64
      %s81 = sphi 0, %s65
      %s85 = sphi 0, %s85
      %s87 = sphi 0, %s85
      %s88 = sphi 0, %s87
      %s102 = sphi 0, %s88
      %s106 = sphi 0, %s106
      %s108 = sphi 0, %s106
      %s109 = sphi 0, %s108
      %s123 = sphi 0, %s109
      %s127 = sphi 0, %s127
      %s129 = sphi 0, %s127
      %s130 = sphi 0, %s129
      %s144 = sphi 0, %s130
      %s148 = sphi 0, %s148
      %s150 = sphi 0, %s148
      %s151 = sphi 0, %s150
      %s165 = sphi 0, %s151
      %s169 = sphi 0, %s169
      %s171 = sphi 0, %s169
      %s172 = sphi 0, %s171
      %s186 = sphi 0, %s172
      %s190 = sphi 0, %s190
      %s192 = sphi 0, %s190
      %s193 = sphi 0, %s192
      %s207 = sphi 0, %s193
      %s211 = sphi 0, %s211
      %s213 = sphi 0, %s211
      %s214 = sphi 0, %s213
      %s228 = sphi 0, %s214
      %s234 = sphi 0, %s236
      %s237 = sphi 0, %s234
      %s238 = sphi 0, %s237
      %s254 = sphi 0, %s238
    $region4: #{tpu_custom_call.1} parent=1 // loop_header_branch
      %28 = sbr.rel (%p26) target = $region8
    $region5: #{tpu_custom_call.1} parent=1 // loop_body
      %s30 = ssub.s32 %s25, 1
      %s31 = ssub.s32 %s25, 2
      %s32 = sadd.s32 %s25, 1
      %s33 = ssub.s32 %s25, %s32
      %p34 = scmp.eq.s32.totalorder %s33, 0
      %s36 = sadd.s32 %s35, 1
      %s37 = scalar_select %p34, %s35, %s36
      %p40 = pneg %p34
      %p41 = scmp.eq.s32.totalorder %s25, 1
      %p42 = por %p40, %p41
      %p43 = scmp.ne.s32.totalorder %s35, %s38
      %p44 = scmp.eq.s32.totalorder %s25, 0
      %p45 = por %p43, %p44
      %p46 = scmp.ne.s32.totalorder %s35, %s38
      %p47 = scmp.eq.s32.totalorder %s30, 1
      %p48 = por %p46, %p47
      %p49 = scmp.ne.s32.totalorder %s38, %s39
      %p50 = scmp.eq.s32.totalorder %s30, 0
      %p51 = por %p49, %p50
      %p52 = scmp.ne.s32.totalorder %s38, %s39
      %p53 = scmp.eq.s32.totalorder %s31, 1
      %p54 = por %p52, %p53
      %p56 = scmp.ne.s32.totalorder %s39, %s55
      %p57 = scmp.eq.s32.totalorder %s31, 0
      %p58 = por %p56, %p57
      %s59 = ssub.s32 %s25, %s32
      %p60 = scmp.eq.s32.totalorder %s59, 0
      %s62 = sadd.s32 %s61, 1
      %s63 = scalar_select %p60, %s61, %s62
      %p66 = pneg %p60
      %p67 = scmp.eq.s32.totalorder %s25, 1
      %p68 = por %p66, %p67
      %p69 = scmp.ne.s32.totalorder %s61, %s64
      %p70 = scmp.eq.s32.totalorder %s25, 0
      %p71 = por %p69, %p70
      %p72 = scmp.ne.s32.totalorder %s61, %s64
      %p73 = scmp.eq.s32.totalorder %s30, 1
      %p74 = por %p72, %p73
      %p75 = scmp.ne.s32.totalorder %s64, %s65
      %p76 = scmp.eq.s32.totalorder %s30, 0
      %p77 = por %p75, %p76
      %p78 = scmp.ne.s32.totalorder %s64, %s65
      %p79 = scmp.eq.s32.totalorder %s31, 1
      %p80 = por %p78, %p79
      %p82 = scmp.ne.s32.totalorder %s65, %s81
      %p83 = scmp.eq.s32.totalorder %s31, 0
      %p84 = por %p82, %p83
      %s86 = sadd.s32 %s85, 1
      %p89 = scmp.eq.s32.totalorder %s25, 1
      %p90 = scmp.ne.s32.totalorder %s85, %s87
      %p91 = scmp.eq.s32.totalorder %s25, 0
      %p92 = por %p90, %p91
      %p93 = scmp.ne.s32.totalorder %s85, %s87
      %p94 = scmp.eq.s32.totalorder %s30, 1
      %p95 = por %p93, %p94
      %p96 = scmp.ne.s32.totalorder %s87, %s88
      %p97 = scmp.eq.s32.totalorder %s30, 0
      %p98 = por %p96, %p97
      %p99 = scmp.ne.s32.totalorder %s87, %s88
      %p100 = scmp.eq.s32.totalorder %s31, 1
      %p101 = por %p99, %p100
      %p103 = scmp.ne.s32.totalorder %s88, %s102
      %p104 = scmp.eq.s32.totalorder %s31, 0
      %p105 = por %p103, %p104
      %s107 = sadd.s32 %s106, 1
      %p110 = scmp.eq.s32.totalorder %s25, 1
      %p111 = scmp.ne.s32.totalorder %s106, %s108
      %p112 = scmp.eq.s32.totalorder %s25, 0
      %p113 = por %p111, %p112
      %p114 = scmp.ne.s32.totalorder %s106, %s108
      %p115 = scmp.eq.s32.totalorder %s30, 1
      %p116 = por %p114, %p115
      %p117 = scmp.ne.s32.totalorder %s108, %s109
      %p118 = scmp.eq.s32.totalorder %s30, 0
      %p119 = por %p117, %p118
      %p120 = scmp.ne.s32.totalorder %s108, %s109
      %p121 = scmp.eq.s32.totalorder %s31, 1
      %p122 = por %p120, %p121
      %p124 = scmp.ne.s32.totalorder %s109, %s123
      %p125 = scmp.eq.s32.totalorder %s31, 0
      %p126 = por %p124, %p125
      %s128 = sadd.s32 %s127, 1
      %p131 = scmp.eq.s32.totalorder %s25, 1
      %p132 = scmp.ne.s32.totalorder %s127, %s129
      %p133 = scmp.eq.s32.totalorder %s25, 0
      %p134 = por %p132, %p133
      %p135 = scmp.ne.s32.totalorder %s127, %s129
      %p136 = scmp.eq.s32.totalorder %s30, 1
      %p137 = por %p135, %p136
      %p138 = scmp.ne.s32.totalorder %s129, %s130
      %p139 = scmp.eq.s32.totalorder %s30, 0
      %p140 = por %p138, %p139
      %p141 = scmp.ne.s32.totalorder %s129, %s130
      %p142 = scmp.eq.s32.totalorder %s31, 1
      %p143 = por %p141, %p142
      %p145 = scmp.ne.s32.totalorder %s130, %s144
      %p146 = scmp.eq.s32.totalorder %s31, 0
      %p147 = por %p145, %p146
      %s149 = sadd.s32 %s148, 1
      %p152 = scmp.eq.s32.totalorder %s25, 1
      %p153 = scmp.ne.s32.totalorder %s148, %s150
      %p154 = scmp.eq.s32.totalorder %s25, 0
      %p155 = por %p153, %p154
      %p156 = scmp.ne.s32.totalorder %s148, %s150
      %p157 = scmp.eq.s32.totalorder %s30, 1
      %p158 = por %p156, %p157
      %p159 = scmp.ne.s32.totalorder %s150, %s151
      %p160 = scmp.eq.s32.totalorder %s30, 0
      %p161 = por %p159, %p160
      %p162 = scmp.ne.s32.totalorder %s150, %s151
      %p163 = scmp.eq.s32.totalorder %s31, 1
      %p164 = por %p162, %p163
      %p166 = scmp.ne.s32.totalorder %s151, %s165
      %p167 = scmp.eq.s32.totalorder %s31, 0
      %p168 = por %p166, %p167
      %s170 = sadd.s32 %s169, 1
      %p173 = scmp.eq.s32.totalorder %s25, 1
      %p174 = scmp.ne.s32.totalorder %s169, %s171
      %p175 = scmp.eq.s32.totalorder %s25, 0
      %p176 = por %p174, %p175
      %p177 = scmp.ne.s32.totalorder %s169, %s171
      %p178 = scmp.eq.s32.totalorder %s30, 1
      %p179 = por %p177, %p178
      %p180 = scmp.ne.s32.totalorder %s171, %s172
      %p181 = scmp.eq.s32.totalorder %s30, 0
      %p182 = por %p180, %p181
      %p183 = scmp.ne.s32.totalorder %s171, %s172
      %p184 = scmp.eq.s32.totalorder %s31, 1
      %p185 = por %p183, %p184
      %p187 = scmp.ne.s32.totalorder %s172, %s186
      %p188 = scmp.eq.s32.totalorder %s31, 0
      %p189 = por %p187, %p188
      %s191 = sadd.s32 %s190, 1
      %p194 = scmp.eq.s32.totalorder %s25, 1
      %p195 = scmp.ne.s32.totalorder %s190, %s192
      %p196 = scmp.eq.s32.totalorder %s25, 0
      %p197 = por %p195, %p196
      %p198 = scmp.ne.s32.totalorder %s190, %s192
      %p199 = scmp.eq.s32.totalorder %s30, 1
      %p200 = por %p198, %p199
      %p201 = scmp.ne.s32.totalorder %s192, %s193
      %p202 = scmp.eq.s32.totalorder %s30, 0
      %p203 = por %p201, %p202
      %p204 = scmp.ne.s32.totalorder %s192, %s193
      %p205 = scmp.eq.s32.totalorder %s31, 1
      %p206 = por %p204, %p205
      %p208 = scmp.ne.s32.totalorder %s193, %s207
      %p209 = scmp.eq.s32.totalorder %s31, 0
      %p210 = por %p208, %p209
      %s212 = sadd.s32 %s211, 1
      %p215 = scmp.eq.s32.totalorder %s25, 1
      %p216 = scmp.ne.s32.totalorder %s211, %s213
      %p217 = scmp.eq.s32.totalorder %s25, 0
      %p218 = por %p216, %p217
      %p219 = scmp.ne.s32.totalorder %s211, %s213
      %p220 = scmp.eq.s32.totalorder %s30, 1
      %p221 = por %p219, %p220
      %p222 = scmp.ne.s32.totalorder %s213, %s214
      %p223 = scmp.eq.s32.totalorder %s30, 0
      %p224 = por %p222, %p223
      %p225 = scmp.ne.s32.totalorder %s213, %s214
      %p226 = scmp.eq.s32.totalorder %s31, 1
      %p227 = por %p225, %p226
      %p229 = scmp.ne.s32.totalorder %s214, %s228
      %p230 = scmp.eq.s32.totalorder %s31, 0
      %p231 = por %p229, %p230
      %s232 = ssub.s32 %s25, %s32
      %p233 = scmp.eq.s32.totalorder %s232, 0
      %s235 = sadd.s32 %s234, 1
      %s236 = scalar_select %p233, %s234, %s235
      %p239 = pneg %p233
      %p240 = scmp.eq.s32.totalorder %s25, 1
      %p241 = por %p239, %p240
      %p242 = scmp.ne.s32.totalorder %s234, %s237
      %p243 = scmp.eq.s32.totalorder %s25, 0
      %p244 = por %p242, %p243
      %p245 = scmp.ne.s32.totalorder %s234, %s237
      %p246 = scmp.eq.s32.totalorder %s30, 1
      %p247 = por %p245, %p246
      %p248 = scmp.ne.s32.totalorder %s237, %s238
      %p249 = scmp.eq.s32.totalorder %s30, 0
      %p250 = por %p248, %p249
      %p251 = scmp.ne.s32.totalorder %s237, %s238
      %p252 = scmp.eq.s32.totalorder %s31, 1
      %p253 = por %p251, %p252
      %p255 = scmp.ne.s32.totalorder %s238, %s254
      %p256 = scmp.eq.s32.totalorder %s31, 0
      %p257 = por %p255, %p256
      %p258 = scmp.le.s32.totalorder 1, %s25
      %p259 = scmp.lt.s32.totalorder %s25, 3
      %p260 = pnand %p258, %p259
      %p261 = pneg %p260
      // Predicated region
      $region9: #{tpu_custom_call.1} parent=5 // pred_check
        _
      $region10: #{tpu_custom_call.1} parent=5 // pred_check_branch
        %263 = sbr.rel (%p260) target = $region12
      $region11: #{tpu_custom_call.1} parent=5 // pred_region
        %s264 = ssub.s32 %s25, 1
        // Predicated region
        $region13: #{tpu_custom_call.1} parent=11 // pred_check
          %p265 = pneg %p98
        $region14: #{tpu_custom_call.1} parent=11 // pred_check_branch
          %267 = sbr.rel (%p265) target = $region16
        $region15: #{tpu_custom_call.1} parent=11 // pred_region
          %s269 = ssub.s32 1024, 1024
          %270 = vsyncadd [#allocation6], %s269
          %s271 = sshll.u32 [#allocation7], 4
          %s272 = int_to_ptr.vmem [resolvable:$true] %s271
          %277 = dma.hbm_to_vmem [thread:$0]  %s2, 1024, %s272, [#allocation6], 64, 64, 4
        $region16: #{tpu_custom_call.1} parent=11 // pred_fallthru
          _
        // Predicated region
        $region17: #{tpu_custom_call.1} parent=11 // pred_check
          %p278 = pneg %p119
        $region18: #{tpu_custom_call.1} parent=11 // pred_check_branch
          %280 = sbr.rel (%p278) target = $region20
        $region19: #{tpu_custom_call.1} parent=11 // pred_region
          _
        $region20: #{tpu_custom_call.1} parent=11 // pred_fallthru
          _
        // Predicated region
        $region21: #{tpu_custom_call.1} parent=11 // pred_check
          %p281 = pneg %p140
        $region22: #{tpu_custom_call.1} parent=11 // pred_check_branch
          %283 = sbr.rel (%p281) target = $region24
        $region23: #{tpu_custom_call.1} parent=11 // pred_region
          _
        $region24: #{tpu_custom_call.1} parent=11 // pred_fallthru
          _
        // Predicated region
        $region25: #{tpu_custom_call.1} parent=11 // pred_check
          %p284 = pneg %p161
        $region26: #{tpu_custom_call.1} parent=11 // pred_check_branch
          %286 = sbr.rel (%p284) target = $region28
        $region27: #{tpu_custom_call.1} parent=11 // pred_region
          %s288 = ssub.s32 1024, 1024
          %289 = vsyncadd [#allocation9], %s288
          %s290 = sshll.u32 [#allocation8], 4
          %s291 = int_to_ptr.vmem [resolvable:$true] %s290
          %296 = dma.hbm_to_vmem [thread:$0]  %s5, 1024, %s291, [#allocation9], 64, 64, 4
        $region28: #{tpu_custom_call.1} parent=11 // pred_fallthru
          _
        // Predicated region
        $region29: #{tpu_custom_call.1} parent=11 // pred_check
          %p297 = pneg %p182
        $region30: #{tpu_custom_call.1} parent=11 // pred_check_branch
          %299 = sbr.rel (%p297) target = $region32
        $region31: #{tpu_custom_call.1} parent=11 // pred_region
          _
        $region32: #{tpu_custom_call.1} parent=11 // pred_fallthru
          _
        // Predicated region
        $region33: #{tpu_custom_call.1} parent=11 // pred_check
          %p300 = pneg %p203
        $region34: #{tpu_custom_call.1} parent=11 // pred_check_branch
          %302 = sbr.rel (%p300) target = $region36
        $region35: #{tpu_custom_call.1} parent=11 // pred_region
          %s304 = ssub.s32 1024, 1024
          %305 = vsyncadd [#allocation9], %s304
          %s306 = sshll.u32 [#allocation10], 4
          %s307 = int_to_ptr.vmem [resolvable:$true] %s306
          %312 = dma.hbm_to_vmem [thread:$0]  %s7, 1024, %s307, [#allocation9], 64, 64, 4
        $region36: #{tpu_custom_call.1} parent=11 // pred_fallthru
          _
        // Predicated region
        $region37: #{tpu_custom_call.1} parent=11 // pred_check
          %p313 = pneg %p224
        $region38: #{tpu_custom_call.1} parent=11 // pred_check_branch
          %315 = sbr.rel (%p313) target = $region40
        $region39: #{tpu_custom_call.1} parent=11 // pred_region
          _
        $region40: #{tpu_custom_call.1} parent=11 // pred_fallthru
          _
      $region12: #{tpu_custom_call.1} parent=5 // pred_fallthru
        _
      %p316 = scmp.lt.s32.totalorder %s25, 2
      // Predicated region
      $region41: #{tpu_custom_call.1} parent=5 // pred_check
        %p317 = pneg %p316
      $region42: #{tpu_custom_call.1} parent=5 // pred_check_branch
        %319 = sbr.rel (%p317) target = $region44
      $region43: #{tpu_custom_call.1} parent=5 // pred_region
        // Predicated region
        $region45: #{tpu_custom_call.1} parent=43 // pred_check
          %p320 = pneg %p45
        $region46: #{tpu_custom_call.1} parent=43 // pred_check_branch
          %322 = sbr.rel (%p320) target = $region48
        $region47: #{tpu_custom_call.1} parent=43 // pred_region
          %s323 = sand.u32 %s35, 1
          %s324 = scalar_lea.sflag [#allocation3], %s323
          %s325 = sand.u32 %s35, 1
          %s326 = smul.addr %s325, 256
          %s327 = scalar_lea.vmem [#allocation2], %s326
          %s329 = ssub.s32 4096, 4096
          %330 = vsyncadd %s324, %s329
          %s331 = smul.addr %s25, 64
          %s332 = smul.addr %s331, 64
          %s333 = scalar_lea.hbm %s0, %s332
          %s334 = sshll.u32 %s327, 4
          %s335 = int_to_ptr.vmem [resolvable:$true] %s334
          %340 = dma.hbm_to_vmem [thread:$0]  %s333, 4096, %s335, %s324, 128, 128, 8
        $region48: #{tpu_custom_call.1} parent=43 // pred_fallthru
          _
        // Predicated region
        $region49: #{tpu_custom_call.1} parent=43 // pred_check
          %p341 = pneg %p71
        $region50: #{tpu_custom_call.1} parent=43 // pred_check_branch
          %343 = sbr.rel (%p341) target = $region52
        $region51: #{tpu_custom_call.1} parent=43 // pred_region
          %s344 = sand.u32 %s25, 1
          %s345 = scalar_lea.sflag [#allocation6], %s344
          %s346 = sand.u32 %s61, 1
          %s347 = smul.addr %s346, 128
          %s348 = scalar_lea.vmem [#allocation5], %s347
          %s350 = ssub.s32 2048, 2048
          %351 = vsyncadd %s345, %s350
          %s352 = smul.addr %s25, 32
          %s353 = smul.addr %s352, 64
          %s354 = scalar_lea.hbm %s1, %s353
          %s355 = sshll.u32 %s348, 4
          %s356 = int_to_ptr.vmem [resolvable:$true] %s355
          %361 = dma.hbm_to_vmem [thread:$0]  %s354, 2048, %s356, %s345, 64, 64, 4
        $region52: #{tpu_custom_call.1} parent=43 // pred_fallthru
          _
      $region44: #{tpu_custom_call.1} parent=5 // pred_fallthru
        _
      %p362 = scmp.le.s32.totalorder 1, %s25
      %p363 = scmp.lt.s32.totalorder %s25, 3
      %p364 = pnand %p362, %p363
      %p365 = pneg %p364
      // Predicated region
      $region53: #{tpu_custom_call.1} parent=5 // pred_check
        _
      $region54: #{tpu_custom_call.1} parent=5 // pred_check_branch
        %367 = sbr.rel (%p364) target = $region56
      $region55: #{tpu_custom_call.1} parent=5 // pred_region
        %s368 = ssub.s32 %s25, 1
        %s369 = sand.u32 %s38, 1
        %s370 = scalar_lea.sflag [#allocation3], %s369
        %s371 = sand.u32 %s38, 1
        %s372 = smul.addr %s371, 256
        %s373 = scalar_lea.vmem [#allocation2], %s372
        // Predicated region
        $region57: #{tpu_custom_call.1} parent=55 // pred_check
          %p374 = pneg %p51
        $region58: #{tpu_custom_call.1} parent=55 // pred_check_branch
          %376 = sbr.rel (%p374) target = $region60
        $region59: #{tpu_custom_call.1} parent=55 // pred_region
          %377 = dma.done %s370, 4096
        $region60: #{tpu_custom_call.1} parent=55 // pred_fallthru
          _
        %s378 = sand.u32 %s30, 1
        %s379 = scalar_lea.sflag [#allocation6], %s378
        %s380 = sand.u32 %s64, 1
        %s381 = smul.addr %s380, 128
        %s382 = scalar_lea.vmem [#allocation5], %s381
        // Predicated region
        $region61: #{tpu_custom_call.1} parent=55 // pred_check
          %p383 = pneg %p77
        $region62: #{tpu_custom_call.1} parent=55 // pred_check_branch
          %385 = sbr.rel (%p383) target = $region64
        $region63: #{tpu_custom_call.1} parent=55 // pred_region
          %386 = dma.done %s379, 2048
        $region64: #{tpu_custom_call.1} parent=55 // pred_fallthru
          _
        // Predicated region
        $region65: #{tpu_custom_call.1} parent=55 // pred_check
          %p387 = pneg %p98
        $region66: #{tpu_custom_call.1} parent=55 // pred_check_branch
          %389 = sbr.rel (%p387) target = $region68
        $region67: #{tpu_custom_call.1} parent=55 // pred_region
          %390 = dma.done [#allocation6], 1024
        $region68: #{tpu_custom_call.1} parent=55 // pred_fallthru
          _
        // Predicated region
        $region69: #{tpu_custom_call.1} parent=55 // pred_check
          %p391 = pneg %p161
        $region70: #{tpu_custom_call.1} parent=55 // pred_check_branch
          %393 = sbr.rel (%p391) target = $region72
        $region71: #{tpu_custom_call.1} parent=55 // pred_region
          %394 = dma.done [#allocation9], 1024
        $region72: #{tpu_custom_call.1} parent=55 // pred_fallthru
          _
        // Predicated region
        $region73: #{tpu_custom_call.1} parent=55 // pred_check
          %p395 = pneg %p203
        $region74: #{tpu_custom_call.1} parent=55 // pred_check_branch
          %397 = sbr.rel (%p395) target = $region76
        $region75: #{tpu_custom_call.1} parent=55 // pred_region
          %398 = dma.done [#allocation9], 1024
        $region76: #{tpu_custom_call.1} parent=55 // pred_fallthru
          _
        %s399 = sand.u32 %s38, 1
        %s400 = scalar_lea.sflag [#allocation3], %s399
        %s401 = sand.u32 %s38, 1
        %s402 = smul.addr %s401, 256
        %s403 = scalar_lea.vmem [#allocation2], %s402
        %p404 = pneg %p51
        %p405 = pneg %p48
        %s406 = sand.u32 %s30, 1
        %s407 = scalar_lea.sflag [#allocation6], %s406
        %s408 = sand.u32 %s64, 1
        %s409 = smul.addr %s408, 128
        %s410 = scalar_lea.vmem [#allocation5], %s409
        %p411 = pneg %p77
        %p412 = pneg %p74
        %p413 = pneg %p98
        %p414 = pneg %p95
        %p415 = pneg %p119
        %p416 = pneg %p116
        %p417 = pneg %p140
        %p418 = pneg %p137
        %p419 = pneg %p161
        %p420 = pneg %p158
        %p421 = pneg %p182
        %p422 = pneg %p179
        %p423 = pneg %p203
        %p424 = pneg %p200
        %p425 = pneg %p224
        %p426 = pneg %p221
        %p427 = pneg %p250
        %p428 = pneg %p247
        %s429 = sand.u32 %s237, 1
        %s430 = scalar_lea.sflag [#allocation4], %s429
        %s431 = sand.u32 %s237, 1
        %s432 = smul.addr %s431, 4
        %s433 = scalar_lea.vmem [#allocation11], %s432
        %v435 = vld [vmem:[%s373] sm:$0xff]
        %v436 = vld [vmem:[%s373 + $0x8] sm:$0xff]
        %v437 = vld [vmem:[%s373 + $0x10] sm:$0xff]
        %v438 = vld [vmem:[%s373 + $0x18] sm:$0xff]
        %v439 = vld [vmem:[%s373 + $0x20] sm:$0xff]
        %v440 = vld [vmem:[%s373 + $0x28] sm:$0xff]
        %v441 = vld [vmem:[%s373 + $0x30] sm:$0xff]
        %v442 = vld [vmem:[%s373 + $0x38] sm:$0xff]
        %v443 = vld [vmem:[%s373 + $0x40] sm:$0xff]
        %v444 = vld [vmem:[%s373 + $0x48] sm:$0xff]
        %v445 = vld [vmem:[%s373 + $0x50] sm:$0xff]
        %v446 = vld [vmem:[%s373 + $0x58] sm:$0xff]
        %v447 = vld [vmem:[%s373 + $0x60] sm:$0xff]
        %v448 = vld [vmem:[%s373 + $0x68] sm:$0xff]
        %v449 = vld [vmem:[%s373 + $0x70] sm:$0xff]
        %v450 = vld [vmem:[%s373 + $0x78] sm:$0xff]
        %v451 = vld [vmem:[%s373 + $0x80] sm:$0xff]
        %v452 = vld [vmem:[%s373 + $0x88] sm:$0xff]
        %v453 = vld [vmem:[%s373 + $0x90] sm:$0xff]
        %v454 = vld [vmem:[%s373 + $0x98] sm:$0xff]
        %v455 = vld [vmem:[%s373 + $0xa0] sm:$0xff]
        %v456 = vld [vmem:[%s373 + $0xa8] sm:$0xff]
        %v457 = vld [vmem:[%s373 + $0xb0] sm:$0xff]
        %v458 = vld [vmem:[%s373 + $0xb8] sm:$0xff]
        %v459 = vld [vmem:[%s373 + $0xc0] sm:$0xff]
        %v460 = vld [vmem:[%s373 + $0xc8] sm:$0xff]
        %v461 = vld [vmem:[%s373 + $0xd0] sm:$0xff]
        %v462 = vld [vmem:[%s373 + $0xd8] sm:$0xff]
        %v463 = vld [vmem:[%s373 + $0xe0] sm:$0xff]
        %v464 = vld [vmem:[%s373 + $0xe8] sm:$0xff]
        %v465 = vld [vmem:[%s373 + $0xf0] sm:$0xff]
        %v466 = vld [vmem:[%s373 + $0xf8] sm:$0xff]
        %v467 = vld [vmem:[%s382] sm:$0xf]
        %v468 = vld [vmem:[%s382 + $0x4] sm:$0xf]
        %v469 = vld [vmem:[%s382 + $0x8] sm:$0xf]
        %v470 = vld [vmem:[%s382 + $0xc] sm:$0xf]
        %v471 = vld [vmem:[%s382 + $0x10] sm:$0xf]
        %v472 = vld [vmem:[%s382 + $0x14] sm:$0xf]
        %v473 = vld [vmem:[%s382 + $0x18] sm:$0xf]
        %v474 = vld [vmem:[%s382 + $0x1c] sm:$0xf]
        %v475 = vld [vmem:[%s382 + $0x20] sm:$0xf]
        %v476 = vld [vmem:[%s382 + $0x24] sm:$0xf]
        %v477 = vld [vmem:[%s382 + $0x28] sm:$0xf]
        %v478 = vld [vmem:[%s382 + $0x2c] sm:$0xf]
        %v479 = vld [vmem:[%s382 + $0x30] sm:$0xf]
        %v480 = vld [vmem:[%s382 + $0x34] sm:$0xf]
        %v481 = vld [vmem:[%s382 + $0x38] sm:$0xf]
        %v482 = vld [vmem:[%s382 + $0x3c] sm:$0xf]
        %v483 = vld [vmem:[%s382 + $0x40] sm:$0xf]
        %v484 = vld [vmem:[%s382 + $0x44] sm:$0xf]
        %v485 = vld [vmem:[%s382 + $0x48] sm:$0xf]
        %v486 = vld [vmem:[%s382 + $0x4c] sm:$0xf]
        %v487 = vld [vmem:[%s382 + $0x50] sm:$0xf]
        %v488 = vld [vmem:[%s382 + $0x54] sm:$0xf]
        %v489 = vld [vmem:[%s382 + $0x58] sm:$0xf]
        %v490 = vld [vmem:[%s382 + $0x5c] sm:$0xf]
        %v491 = vld [vmem:[%s382 + $0x60] sm:$0xf]
        %v492 = vld [vmem:[%s382 + $0x64] sm:$0xf]
        %v493 = vld [vmem:[%s382 + $0x68] sm:$0xf]
        %v494 = vld [vmem:[%s382 + $0x6c] sm:$0xf]
        %v495 = vld [vmem:[%s382 + $0x70] sm:$0xf]
        %v496 = vld [vmem:[%s382 + $0x74] sm:$0xf]
        %v497 = vld [vmem:[%s382 + $0x78] sm:$0xf]
        %v498 = vld [vmem:[%s382 + $0x7c] sm:$0xf]
        %v499 = vld [vmem:[%s3] sm:$0x1]
        %v501 = vlaneseq
        %v502 = vshrl.u32 %v501, 7
        %v503 = vsub.s32 0, %v502
        %v504 = vrot.slane %v499, %v503
        %v538 = vunpack.c.l.b16 %v435
        %v539 = vunpack.c.h.b16 %v435
        %v540 = vunpack.c.l.b16 %v436
        %v541 = vunpack.c.h.b16 %v436
        %v542 = vunpack.c.l.b16 %v437
        %v543 = vunpack.c.h.b16 %v437
        %v544 = vunpack.c.l.b16 %v438
        %v545 = vunpack.c.h.b16 %v438
        %v546 = vunpack.c.l.b16 %v439
        %v547 = vunpack.c.h.b16 %v439
        %v548 = vunpack.c.l.b16 %v440
        %v549 = vunpack.c.h.b16 %v440
        %v550 = vunpack.c.l.b16 %v441
        %v551 = vunpack.c.h.b16 %v441
        %v552 = vunpack.c.l.b16 %v442
        %v553 = vunpack.c.h.b16 %v442
        %v554 = vunpack.c.l.b16 %v443
        %v555 = vunpack.c.h.b16 %v443
        %v556 = vunpack.c.l.b16 %v444
        %v557 = vunpack.c.h.b16 %v444
        %v558 = vunpack.c.l.b16 %v445
        %v559 = vunpack.c.h.b16 %v445
        %v560 = vunpack.c.l.b16 %v446
        %v561 = vunpack.c.h.b16 %v446
        %v562 = vunpack.c.l.b16 %v447
        %v563 = vunpack.c.h.b16 %v447
        %v564 = vunpack.c.l.b16 %v448
        %v565 = vunpack.c.h.b16 %v448
        %v566 = vunpack.c.l.b16 %v449
        %v567 = vunpack.c.h.b16 %v449
        %v568 = vunpack.c.l.b16 %v450
        %v569 = vunpack.c.h.b16 %v450
        %v570 = vunpack.c.l.b16 %v451
        %v571 = vunpack.c.h.b16 %v451
        %v572 = vunpack.c.l.b16 %v452
        %v573 = vunpack.c.h.b16 %v452
        %v574 = vunpack.c.l.b16 %v453
        %v575 = vunpack.c.h.b16 %v453
        %v576 = vunpack.c.l.b16 %v454
        %v577 = vunpack.c.h.b16 %v454
        %v578 = vunpack.c.l.b16 %v455
        %v579 = vunpack.c.h.b16 %v455
        %v580 = vunpack.c.l.b16 %v456
        %v581 = vunpack.c.h.b16 %v456
        %v582 = vunpack.c.l.b16 %v457
        %v583 = vunpack.c.h.b16 %v457
        %v584 = vunpack.c.l.b16 %v458
        %v585 = vunpack.c.h.b16 %v458
        %v586 = vunpack.c.l.b16 %v459
        %v587 = vunpack.c.h.b16 %v459
        %v588 = vunpack.c.l.b16 %v460
        %v589 = vunpack.c.h.b16 %v460
        %v590 = vunpack.c.l.b16 %v461
        %v591 = vunpack.c.h.b16 %v461
        %v592 = vunpack.c.l.b16 %v462
        %v593 = vunpack.c.h.b16 %v462
        %v594 = vunpack.c.l.b16 %v463
        %v595 = vunpack.c.h.b16 %v463
        %v596 = vunpack.c.l.b16 %v464
        %v597 = vunpack.c.h.b16 %v464
        %v598 = vunpack.c.l.b16 %v465
        %v599 = vunpack.c.h.b16 %v465
        %v600 = vunpack.c.l.b16 %v466
        %v601 = vunpack.c.h.b16 %v466
        %v602 = vpack.c.b16 %v540, %v538
        %v603 = vpack.c.b16 %v541, %v539
        %v604 = vpack.c.b16 %v544, %v542
        %v605 = vpack.c.b16 %v545, %v543
        %v606 = vpack.c.b16 %v548, %v546
        %v607 = vpack.c.b16 %v549, %v547
        %v608 = vpack.c.b16 %v552, %v550
        %v609 = vpack.c.b16 %v553, %v551
        %v610 = vpack.c.b16 %v556, %v554
        %v611 = vpack.c.b16 %v557, %v555
        %v612 = vpack.c.b16 %v560, %v558
        %v613 = vpack.c.b16 %v561, %v559
        %v614 = vpack.c.b16 %v564, %v562
        %v615 = vpack.c.b16 %v565, %v563
        %v616 = vpack.c.b16 %v568, %v566
        %v617 = vpack.c.b16 %v569, %v567
        %v618 = vpack.c.b16 %v572, %v570
        %v619 = vpack.c.b16 %v573, %v571
        %v620 = vpack.c.b16 %v576, %v574
        %v621 = vpack.c.b16 %v577, %v575
        %v622 = vpack.c.b16 %v580, %v578
        %v623 = vpack.c.b16 %v581, %v579
        %v624 = vpack.c.b16 %v584, %v582
        %v625 = vpack.c.b16 %v585, %v583
        %v626 = vpack.c.b16 %v588, %v586
        %v627 = vpack.c.b16 %v589, %v587
        %v628 = vpack.c.b16 %v592, %v590
        %v629 = vpack.c.b16 %v593, %v591
        %v630 = vpack.c.b16 %v596, %v594
        %v631 = vpack.c.b16 %v597, %v595
        %v632 = vpack.c.b16 %v600, %v598
        %v633 = vpack.c.b16 %v601, %v599
        %v698 = vunpack.c.l.b16 %v467
        %v699 = vunpack.c.l.b16 %v468
        %v700 = vunpack.c.l.b16 %v469
        %v701 = vunpack.c.l.b16 %v470
        %v702 = vunpack.c.l.b16 %v471
        %v703 = vunpack.c.l.b16 %v472
        %v704 = vunpack.c.l.b16 %v473
        %v705 = vunpack.c.l.b16 %v474
        %v706 = vunpack.c.l.b16 %v475
        %v707 = vunpack.c.l.b16 %v476
        %v708 = vunpack.c.l.b16 %v477
        %v709 = vunpack.c.l.b16 %v478
        %v710 = vunpack.c.l.b16 %v479
        %v711 = vunpack.c.l.b16 %v480
        %v712 = vunpack.c.l.b16 %v481
        %v713 = vunpack.c.l.b16 %v482
        %v714 = vunpack.c.l.b16 %v483
        %v715 = vunpack.c.l.b16 %v484
        %v716 = vunpack.c.l.b16 %v485
        %v717 = vunpack.c.l.b16 %v486
        %v718 = vunpack.c.l.b16 %v487
        %v719 = vunpack.c.l.b16 %v488
        %v720 = vunpack.c.l.b16 %v489
        %v721 = vunpack.c.l.b16 %v490
        %v722 = vunpack.c.l.b16 %v491
        %v723 = vunpack.c.l.b16 %v492
        %v724 = vunpack.c.l.b16 %v493
        %v725 = vunpack.c.l.b16 %v494
        %v726 = vunpack.c.l.b16 %v495
        %v727 = vunpack.c.l.b16 %v496
        %v728 = vunpack.c.l.b16 %v497
        %v729 = vunpack.c.l.b16 %v498
        %v730 = vpack.c.b16 %v699, %v698
        %v731 = vpack.c.b16 %v701, %v700
        %v732 = vpack.c.b16 %v703, %v702
        %v733 = vpack.c.b16 %v705, %v704
        %v734 = vpack.c.b16 %v707, %v706
        %v735 = vpack.c.b16 %v709, %v708
        %v736 = vpack.c.b16 %v711, %v710
        %v737 = vpack.c.b16 %v713, %v712
        %v738 = vpack.c.b16 %v715, %v714
        %v739 = vpack.c.b16 %v717, %v716
        %v740 = vpack.c.b16 %v719, %v718
        %v741 = vpack.c.b16 %v721, %v720
        %v742 = vpack.c.b16 %v723, %v722
        %v743 = vpack.c.b16 %v725, %v724
        %v744 = vpack.c.b16 %v727, %v726
        %v745 = vpack.c.b16 %v729, %v728
        %762 = vmatprep.subr.bf16.mxu0 0
        %763 = vmatpush1.bf16.msra.mxu0 %v737
        %764 = vmatprep.subr.bf16.mxu0 0
        %765 = vmatpush1.bf16.msra.mxu0 %v736
        %766 = vmatprep.subr.bf16.mxu0 0
        %767 = vmatpush1.bf16.msra.mxu0 %v735
        %768 = vmatprep.subr.bf16.mxu0 0
        %769 = vmatpush1.bf16.msra.mxu0 %v734
        %770 = vmatprep.subr.bf16.mxu0 0
        %771 = vmatpush1.bf16.msra.mxu0 %v733
        %772 = vmatprep.subr.bf16.mxu0 0
        %773 = vmatpush1.bf16.msra.mxu0 %v732
        %774 = vmatprep.subr.bf16.mxu0 0
        %775 = vmatpush1.bf16.msra.mxu0 %v731
        %776 = vmatprep.subr.bf16.mxu0 0
        %777 = vmatpush1.bf16.msra.mxu0 %v730
        %778 = vmatprep.subr.bf16.mxu0 0
        %779 = vmatpush2.bf16.msra.mxu0 %v745
        %780 = vmatprep.subr.bf16.mxu0 0
        %781 = vmatpush2.bf16.msra.mxu0 %v744
        %782 = vmatprep.subr.bf16.mxu0 0
        %783 = vmatpush2.bf16.msra.mxu0 %v743
        %784 = vmatprep.subr.bf16.mxu0 0
        %785 = vmatpush2.bf16.msra.mxu0 %v742
        %786 = vmatprep.subr.bf16.mxu0 0
        %787 = vmatpush2.bf16.msra.mxu0 %v741
        %788 = vmatprep.subr.bf16.mxu0 0
        %789 = vmatpush2.bf16.msra.mxu0 %v740
        %790 = vmatprep.subr.bf16.mxu0 0
        %791 = vmatpush2.bf16.msra.mxu0 %v739
        %792 = vmatprep.subr.bf16.mxu0 0
        %793 = vmatpush2.bf16.msra.mxu0 %v738
        %794 = vmatprep.mubr.bf16.mxu0 %v603
        %795 = vmatmul.mubr.bf16.gmra.mxu0 %v602
        %v796 = vpop.f32.mrf.mxu0
        %v797 = vadd.f32 %v504, %v796
        %v798 = vpop.f32.mrf.mxu0
        %v799 = vpop.f32.mrf.mxu0
        %v800 = vadd.f32 %v504, %v799
        %v801 = vpop.f32.mrf.mxu0
        %802 = vmatprep.mubr.bf16.mxu0 %v605
        %803 = vmatmul.mubr.bf16.gmra.mxu0 %v604
        %v804 = vpop.f32.mrf.mxu0
        %v805 = vadd.f32 %v504, %v804
        %v806 = vpop.f32.mrf.mxu0
        %v807 = vpop.f32.mrf.mxu0
        %v808 = vadd.f32 %v504, %v807
        %v809 = vpop.f32.mrf.mxu0
        %810 = vmatprep.mubr.bf16.mxu0 %v607
        %811 = vmatmul.mubr.bf16.gmra.mxu0 %v606
        %v812 = vpop.f32.mrf.mxu0
        %v813 = vadd.f32 %v504, %v812
        %v814 = vpop.f32.mrf.mxu0
        %v815 = vpop.f32.mrf.mxu0
        %v816 = vadd.f32 %v504, %v815
        %v817 = vpop.f32.mrf.mxu0
        %818 = vmatprep.mubr.bf16.mxu0 %v609
        %819 = vmatmul.mubr.bf16.gmra.mxu0 %v608
        %v820 = vpop.f32.mrf.mxu0
        %v821 = vadd.f32 %v504, %v820
        %v822 = vpop.f32.mrf.mxu0
        %v823 = vpop.f32.mrf.mxu0
        %v824 = vadd.f32 %v504, %v823
        %v825 = vpop.f32.mrf.mxu0
        %826 = vmatprep.mubr.bf16.mxu0 %v611
        %827 = vmatmul.mubr.bf16.gmra.mxu0 %v610
        %v828 = vpop.f32.mrf.mxu0
        %v829 = vadd.f32 %v504, %v828
        %v830 = vpop.f32.mrf.mxu0
        %v831 = vpop.f32.mrf.mxu0
        %v832 = vadd.f32 %v504, %v831
        %v833 = vpop.f32.mrf.mxu0
        %834 = vmatprep.mubr.bf16.mxu0 %v613
        %835 = vmatmul.mubr.bf16.gmra.mxu0 %v612
        %v836 = vpop.f32.mrf.mxu0
        %v837 = vadd.f32 %v504, %v836
        %v838 = vpop.f32.mrf.mxu0
        %v839 = vpop.f32.mrf.mxu0
        %v840 = vadd.f32 %v504, %v839
        %v841 = vpop.f32.mrf.mxu0
        %842 = vmatprep.mubr.bf16.mxu0 %v615
        %843 = vmatmul.mubr.bf16.gmra.mxu0 %v614
        %v844 = vpop.f32.mrf.mxu0
        %v845 = vadd.f32 %v504, %v844
        %v846 = vpop.f32.mrf.mxu0
        %v847 = vpop.f32.mrf.mxu0
        %v848 = vadd.f32 %v504, %v847
        %v849 = vpop.f32.mrf.mxu0
        %850 = vmatprep.mubr.bf16.mxu0 %v617
        %851 = vmatmul.mubr.bf16.gmra.mxu0 %v616
        %v852 = vpop.f32.mrf.mxu0
        %v853 = vadd.f32 %v504, %v852
        %v854 = vpop.f32.mrf.mxu0
        %v855 = vpop.f32.mrf.mxu0
        %v856 = vadd.f32 %v504, %v855
        %v857 = vpop.f32.mrf.mxu0
        %858 = vmatprep.mubr.bf16.mxu0 %v619
        %859 = vmatmul.mubr.bf16.gmra.mxu0 %v618
        %v860 = vpop.f32.mrf.mxu0
        %v861 = vadd.f32 %v504, %v860
        %v862 = vpop.f32.mrf.mxu0
        %v863 = vpop.f32.mrf.mxu0
        %v864 = vadd.f32 %v504, %v863
        %v865 = vpop.f32.mrf.mxu0
        %866 = vmatprep.mubr.bf16.mxu0 %v621
        %867 = vmatmul.mubr.bf16.gmra.mxu0 %v620
        %v868 = vpop.f32.mrf.mxu0
        %v869 = vadd.f32 %v504, %v868
        %v870 = vpop.f32.mrf.mxu0
        %v871 = vpop.f32.mrf.mxu0
        %v872 = vadd.f32 %v504, %v871
        %v873 = vpop.f32.mrf.mxu0
        %874 = vmatprep.mubr.bf16.mxu0 %v623
        %875 = vmatmul.mubr.bf16.gmra.mxu0 %v622
        %v876 = vpop.f32.mrf.mxu0
        %v877 = vadd.f32 %v504, %v876
        %v878 = vpop.f32.mrf.mxu0
        %v879 = vpop.f32.mrf.mxu0
        %v880 = vadd.f32 %v504, %v879
        %v881 = vpop.f32.mrf.mxu0
        %882 = vmatprep.mubr.bf16.mxu0 %v625
        %883 = vmatmul.mubr.bf16.gmra.mxu0 %v624
        %v884 = vpop.f32.mrf.mxu0
        %v885 = vadd.f32 %v504, %v884
        %v886 = vpop.f32.mrf.mxu0
        %v887 = vpop.f32.mrf.mxu0
        %v888 = vadd.f32 %v504, %v887
        %v889 = vpop.f32.mrf.mxu0
        %890 = vmatprep.mubr.bf16.mxu0 %v627
        %891 = vmatmul.mubr.bf16.gmra.mxu0 %v626
        %v892 = vpop.f32.mrf.mxu0
        %v893 = vadd.f32 %v504, %v892
        %v894 = vpop.f32.mrf.mxu0
        %v895 = vpop.f32.mrf.mxu0
        %v896 = vadd.f32 %v504, %v895
        %v897 = vpop.f32.mrf.mxu0
        %898 = vmatprep.mubr.bf16.mxu0 %v629
        %899 = vmatmul.mubr.bf16.gmra.mxu0 %v628
        %v900 = vpop.f32.mrf.mxu0
        %v901 = vadd.f32 %v504, %v900
        %v902 = vpop.f32.mrf.mxu0
        %v903 = vpop.f32.mrf.mxu0
        %v904 = vadd.f32 %v504, %v903
        %v905 = vpop.f32.mrf.mxu0
        %906 = vmatprep.mubr.bf16.mxu0 %v631
        %907 = vmatmul.mubr.bf16.gmra.mxu0 %v630
        %v908 = vpop.f32.mrf.mxu0
        %v909 = vadd.f32 %v504, %v908
        %v910 = vpop.f32.mrf.mxu0
        %v911 = vpop.f32.mrf.mxu0
        %v912 = vadd.f32 %v504, %v911
        %v913 = vpop.f32.mrf.mxu0
        %914 = vmatprep.mubr.bf16.mxu0 %v633
        %915 = vmatmul.mubr.bf16.gmra.mxu0 %v632
        %v916 = vpop.f32.mrf.mxu0
        %v917 = vadd.f32 %v504, %v916
        %v918 = vpop.f32.mrf.mxu0
        %v919 = vpop.f32.mrf.mxu0
        %v920 = vadd.f32 %v504, %v919
        %v921 = vpop.f32.mrf.mxu0
        %922 = vdwg.mxu0
        %v923 = vmax.f32 %v797, 0.0
        %v924 = vmax.f32 %v800, 0.0
        %v925 = vmax.f32 %v805, 0.0
        %v926 = vmax.f32 %v808, 0.0
        %v927 = vmax.f32 %v813, 0.0
        %v928 = vmax.f32 %v816, 0.0
        %v929 = vmax.f32 %v821, 0.0
        %v930 = vmax.f32 %v824, 0.0
        %v931 = vmax.f32 %v829, 0.0
        %v932 = vmax.f32 %v832, 0.0
        %v933 = vmax.f32 %v837, 0.0
        %v934 = vmax.f32 %v840, 0.0
        %v935 = vmax.f32 %v845, 0.0
        %v936 = vmax.f32 %v848, 0.0
        %v937 = vmax.f32 %v853, 0.0
        %v938 = vmax.f32 %v856, 0.0
        %v939 = vmax.f32 %v861, 0.0
        %v940 = vmax.f32 %v864, 0.0
        %v941 = vmax.f32 %v869, 0.0
        %v942 = vmax.f32 %v872, 0.0
        %v943 = vmax.f32 %v877, 0.0
        %v944 = vmax.f32 %v880, 0.0
        %v945 = vmax.f32 %v885, 0.0
        %v946 = vmax.f32 %v888, 0.0
        %v947 = vmax.f32 %v893, 0.0
        %v948 = vmax.f32 %v896, 0.0
        %v949 = vmax.f32 %v901, 0.0
        %v950 = vmax.f32 %v904, 0.0
        %v951 = vmax.f32 %v909, 0.0
        %v952 = vmax.f32 %v912, 0.0
        %v953 = vmax.f32 %v917, 0.0
        %v954 = vmax.f32 %v920, 0.0
        %v955 = vpack.c.bf16 %v924, %v923
        %v956 = vpack.c.bf16 %v926, %v925
        %v957 = vpack.c.bf16 %v928, %v927
        %v958 = vpack.c.bf16 %v930, %v929
        %v959 = vpack.c.bf16 %v932, %v931
        %v960 = vpack.c.bf16 %v934, %v933
        %v961 = vpack.c.bf16 %v936, %v935
        %v962 = vpack.c.bf16 %v938, %v937
        %v963 = vpack.c.bf16 %v940, %v939
        %v964 = vpack.c.bf16 %v942, %v941
        %v965 = vpack.c.bf16 %v944, %v943
        %v966 = vpack.c.bf16 %v946, %v945
        %v967 = vpack.c.bf16 %v948, %v947
        %v968 = vpack.c.bf16 %v950, %v949
        %v969 = vpack.c.bf16 %v952, %v951
        %v970 = vpack.c.bf16 %v954, %v953
        %v971 = vld [vmem:[#allocation7] sm:$0xf]
        %v972 = vld [vmem:[#allocation7 + $0x4] sm:$0xf]
        %v973 = vld [vmem:[#allocation7 + $0x8] sm:$0xf]
        %v974 = vld [vmem:[#allocation7 + $0xc] sm:$0xf]
        %v975 = vld [vmem:[#allocation7 + $0x10] sm:$0xf]
        %v976 = vld [vmem:[#allocation7 + $0x14] sm:$0xf]
        %v977 = vld [vmem:[#allocation7 + $0x18] sm:$0xf]
        %v978 = vld [vmem:[#allocation7 + $0x1c] sm:$0xf]
        %v979 = vld [vmem:[#allocation7 + $0x20] sm:$0xf]
        %v980 = vld [vmem:[#allocation7 + $0x24] sm:$0xf]
        %v981 = vld [vmem:[#allocation7 + $0x28] sm:$0xf]
        %v982 = vld [vmem:[#allocation7 + $0x2c] sm:$0xf]
        %v983 = vld [vmem:[#allocation7 + $0x30] sm:$0xf]
        %v984 = vld [vmem:[#allocation7 + $0x34] sm:$0xf]
        %v985 = vld [vmem:[#allocation7 + $0x38] sm:$0xf]
        %v986 = vld [vmem:[#allocation7 + $0x3c] sm:$0xf]
        %v1003 = vunpack.c.l.b16 %v971
        %v1004 = vunpack.c.l.b16 %v972
        %v1005 = vunpack.c.l.b16 %v973
        %v1006 = vunpack.c.l.b16 %v974
        %v1007 = vunpack.c.l.b16 %v975
        %v1008 = vunpack.c.l.b16 %v976
        %v1009 = vunpack.c.l.b16 %v977
        %v1010 = vunpack.c.l.b16 %v978
        %v1011 = vunpack.c.l.b16 %v979
        %v1012 = vunpack.c.l.b16 %v980
        %v1013 = vunpack.c.l.b16 %v981
        %v1014 = vunpack.c.l.b16 %v982
        %v1015 = vunpack.c.l.b16 %v983
        %v1016 = vunpack.c.l.b16 %v984
        %v1017 = vunpack.c.l.b16 %v985
        %v1018 = vunpack.c.l.b16 %v986
        %v1019 = vpack.c.b16 %v1004, %v1003
        %v1020 = vpack.c.b16 %v1006, %v1005
        %v1021 = vpack.c.b16 %v1008, %v1007
        %v1022 = vpack.c.b16 %v1010, %v1009
        %v1023 = vpack.c.b16 %v1012, %v1011
        %v1024 = vpack.c.b16 %v1014, %v1013
        %v1025 = vpack.c.b16 %v1016, %v1015
        %v1026 = vpack.c.b16 %v1018, %v1017
        %1035 = vmatprep.subr.bf16.mxu0 0
        %1036 = vmatpush1.bf16.msra.mxu0 %v1026
        %1037 = vmatprep.subr.bf16.mxu0 0
        %1038 = vmatpush1.bf16.msra.mxu0 %v1025
        %1039 = vmatprep.subr.bf16.mxu0 0
        %1040 = vmatpush1.bf16.msra.mxu0 %v1024
        %1041 = vmatprep.subr.bf16.mxu0 0
        %1042 = vmatpush1.bf16.msra.mxu0 %v1023
        %1043 = vmatprep.subr.bf16.mxu0 0
        %1044 = vmatpush1.bf16.msra.mxu0 %v1022
        %1045 = vmatprep.subr.bf16.mxu0 0
        %1046 = vmatpush1.bf16.msra.mxu0 %v1021
        %1047 = vmatprep.subr.bf16.mxu0 0
        %1048 = vmatpush1.bf16.msra.mxu0 %v1020
        %1049 = vmatprep.subr.bf16.mxu0 0
        %1050 = vmatpush1.bf16.msra.mxu0 %v1019
        %1051 = vmatprep.subr.bf16.mxu0 0
        %1052 = vmatpush2.bf16.msra.mxu0 0
        %1053 = vmatprep.subr.bf16.mxu0 0
        %1054 = vmatpush2.bf16.msra.mxu0 0
        %1055 = vmatprep.subr.bf16.mxu0 0
        %1056 = vmatpush2.bf16.msra.mxu0 0
        %1057 = vmatprep.subr.bf16.mxu0 0
        %1058 = vmatpush2.bf16.msra.mxu0 0
        %1059 = vmatprep.subr.bf16.mxu0 0
        %1060 = vmatpush2.bf16.msra.mxu0 0
        %1061 = vmatprep.subr.bf16.mxu0 0
        %1062 = vmatpush2.bf16.msra.mxu0 0
        %1063 = vmatprep.subr.bf16.mxu0 0
        %1064 = vmatpush2.bf16.msra.mxu0 0
        %1065 = vmatprep.subr.bf16.mxu0 0
        %1066 = vmatpush2.bf16.msra.mxu0 0
        %1067 = vmatprep.mubr.bf16.mxu0 0
        %1068 = vmatmul.mubr.bf16.gmra.mxu0 %v955
        %v1069 = vpop.f32.mrf.mxu0
        %v1070 = vadd.f32 0.0, %v1069
        %v1071 = vpop.f32.mrf.mxu0
        %v1072 = vpop.f32.mrf.mxu0
        %v1073 = vadd.f32 0.0, %v1072
        %v1074 = vpop.f32.mrf.mxu0
        %1075 = vmatprep.mubr.bf16.mxu0 0
        %1076 = vmatmul.mubr.bf16.gmra.mxu0 %v956
        %v1077 = vpop.f32.mrf.mxu0
        %v1078 = vadd.f32 0.0, %v1077
        %v1079 = vpop.f32.mrf.mxu0
        %v1080 = vpop.f32.mrf.mxu0
        %v1081 = vadd.f32 0.0, %v1080
        %v1082 = vpop.f32.mrf.mxu0
        %1083 = vmatprep.mubr.bf16.mxu0 0
        %1084 = vmatmul.mubr.bf16.gmra.mxu0 %v957
        %v1085 = vpop.f32.mrf.mxu0
        %v1086 = vadd.f32 0.0, %v1085
        %v1087 = vpop.f32.mrf.mxu0
        %v1088 = vpop.f32.mrf.mxu0
        %v1089 = vadd.f32 0.0, %v1088
        %v1090 = vpop.f32.mrf.mxu0
        %1091 = vmatprep.mubr.bf16.mxu0 0
        %1092 = vmatmul.mubr.bf16.gmra.mxu0 %v958
        %v1093 = vpop.f32.mrf.mxu0
        %v1094 = vadd.f32 0.0, %v1093
        %v1095 = vpop.f32.mrf.mxu0
        %v1096 = vpop.f32.mrf.mxu0
        %v1097 = vadd.f32 0.0, %v1096
        %v1098 = vpop.f32.mrf.mxu0
        %1099 = vmatprep.mubr.bf16.mxu0 0
        %1100 = vmatmul.mubr.bf16.gmra.mxu0 %v959
        %v1101 = vpop.f32.mrf.mxu0
        %v1102 = vadd.f32 0.0, %v1101
        %v1103 = vpop.f32.mrf.mxu0
        %v1104 = vpop.f32.mrf.mxu0
        %v1105 = vadd.f32 0.0, %v1104
        %v1106 = vpop.f32.mrf.mxu0
        %1107 = vmatprep.mubr.bf16.mxu0 0
        %1108 = vmatmul.mubr.bf16.gmra.mxu0 %v960
        %v1109 = vpop.f32.mrf.mxu0
        %v1110 = vadd.f32 0.0, %v1109
        %v1111 = vpop.f32.mrf.mxu0
        %v1112 = vpop.f32.mrf.mxu0
        %v1113 = vadd.f32 0.0, %v1112
        %v1114 = vpop.f32.mrf.mxu0
        %1115 = vmatprep.mubr.bf16.mxu0 0
        %1116 = vmatmul.mubr.bf16.gmra.mxu0 %v961
        %v1117 = vpop.f32.mrf.mxu0
        %v1118 = vadd.f32 0.0, %v1117
        %v1119 = vpop.f32.mrf.mxu0
        %v1120 = vpop.f32.mrf.mxu0
        %v1121 = vadd.f32 0.0, %v1120
        %v1122 = vpop.f32.mrf.mxu0
        %1123 = vmatprep.mubr.bf16.mxu0 0
        %1124 = vmatmul.mubr.bf16.gmra.mxu0 %v962
        %v1125 = vpop.f32.mrf.mxu0
        %v1126 = vadd.f32 0.0, %v1125
        %v1127 = vpop.f32.mrf.mxu0
        %v1128 = vpop.f32.mrf.mxu0
        %v1129 = vadd.f32 0.0, %v1128
        %v1130 = vpop.f32.mrf.mxu0
        %1131 = vmatprep.mubr.bf16.mxu0 0
        %1132 = vmatmul.mubr.bf16.gmra.mxu0 %v963
        %v1133 = vpop.f32.mrf.mxu0
        %v1134 = vadd.f32 0.0, %v1133
        %v1135 = vpop.f32.mrf.mxu0
        %v1136 = vpop.f32.mrf.mxu0
        %v1137 = vadd.f32 0.0, %v1136
        %v1138 = vpop.f32.mrf.mxu0
        %1139 = vmatprep.mubr.bf16.mxu0 0
        %1140 = vmatmul.mubr.bf16.gmra.mxu0 %v964
        %v1141 = vpop.f32.mrf.mxu0
        %v1142 = vadd.f32 0.0, %v1141
        %v1143 = vpop.f32.mrf.mxu0
        %v1144 = vpop.f32.mrf.mxu0
        %v1145 = vadd.f32 0.0, %v1144
        %v1146 = vpop.f32.mrf.mxu0
        %1147 = vmatprep.mubr.bf16.mxu0 0
        %1148 = vmatmul.mubr.bf16.gmra.mxu0 %v965
        %v1149 = vpop.f32.mrf.mxu0
        %v1150 = vadd.f32 0.0, %v1149
        %v1151 = vpop.f32.mrf.mxu0
        %v1152 = vpop.f32.mrf.mxu0
        %v1153 = vadd.f32 0.0, %v1152
        %v1154 = vpop.f32.mrf.mxu0
        %1155 = vmatprep.mubr.bf16.mxu0 0
        %1156 = vmatmul.mubr.bf16.gmra.mxu0 %v966
        %v1157 = vpop.f32.mrf.mxu0
        %v1158 = vadd.f32 0.0, %v1157
        %v1159 = vpop.f32.mrf.mxu0
        %v1160 = vpop.f32.mrf.mxu0
        %v1161 = vadd.f32 0.0, %v1160
        %v1162 = vpop.f32.mrf.mxu0
        %1163 = vmatprep.mubr.bf16.mxu0 0
        %1164 = vmatmul.mubr.bf16.gmra.mxu0 %v967
        %v1165 = vpop.f32.mrf.mxu0
        %v1166 = vadd.f32 0.0, %v1165
        %v1167 = vpop.f32.mrf.mxu0
        %v1168 = vpop.f32.mrf.mxu0
        %v1169 = vadd.f32 0.0, %v1168
        %v1170 = vpop.f32.mrf.mxu0
        %1171 = vmatprep.mubr.bf16.mxu0 0
        %1172 = vmatmul.mubr.bf16.gmra.mxu0 %v968
        %v1173 = vpop.f32.mrf.mxu0
        %v1174 = vadd.f32 0.0, %v1173
        %v1175 = vpop.f32.mrf.mxu0
        %v1176 = vpop.f32.mrf.mxu0
        %v1177 = vadd.f32 0.0, %v1176
        %v1178 = vpop.f32.mrf.mxu0
        %1179 = vmatprep.mubr.bf16.mxu0 0
        %1180 = vmatmul.mubr.bf16.gmra.mxu0 %v969
        %v1181 = vpop.f32.mrf.mxu0
        %v1182 = vadd.f32 0.0, %v1181
        %v1183 = vpop.f32.mrf.mxu0
        %v1184 = vpop.f32.mrf.mxu0
        %v1185 = vadd.f32 0.0, %v1184
        %v1186 = vpop.f32.mrf.mxu0
        %1187 = vmatprep.mubr.bf16.mxu0 0
        %1188 = vmatmul.mubr.bf16.gmra.mxu0 %v970
        %v1189 = vpop.f32.mrf.mxu0
        %v1190 = vadd.f32 0.0, %v1189
        %v1191 = vpop.f32.mrf.mxu0
        %v1192 = vpop.f32.mrf.mxu0
        %v1193 = vadd.f32 0.0, %v1192
        %v1194 = vpop.f32.mrf.mxu0
        %1195 = vdwg.mxu0
        %v1196 = vpack.c.bf16 %v1073, %v1070
        %v1197 = vpack.c.bf16 %v1081, %v1078
        %v1198 = vpack.c.bf16 %v1089, %v1086
        %v1199 = vpack.c.bf16 %v1097, %v1094
        %v1200 = vpack.c.bf16 %v1105, %v1102
        %v1201 = vpack.c.bf16 %v1113, %v1110
        %v1202 = vpack.c.bf16 %v1121, %v1118
        %v1203 = vpack.c.bf16 %v1129, %v1126
        %v1204 = vpack.c.bf16 %v1137, %v1134
        %v1205 = vpack.c.bf16 %v1145, %v1142
        %v1206 = vpack.c.bf16 %v1153, %v1150
        %v1207 = vpack.c.bf16 %v1161, %v1158
        %v1208 = vpack.c.bf16 %v1169, %v1166
        %v1209 = vpack.c.bf16 %v1177, %v1174
        %v1210 = vpack.c.bf16 %v1185, %v1182
        %v1211 = vpack.c.bf16 %v1193, %v1190
        %v1212 = vld [vmem:[%s4] sm:$0x1]
        %v1214 = vlaneseq
        %v1215 = vshrl.u32 %v1214, 7
        %v1216 = vsub.s32 0, %v1215
        %v1217 = vrot.slane %v1212, %v1216
        %1219 = vmatprep.subr.bf16.mxu0 0
        %1220 = vmatpush1.bf16.msra.mxu0 %v1203
        %1221 = vmatprep.subr.bf16.mxu0 0
        %1222 = vmatpush1.bf16.msra.mxu0 %v1202
        %1223 = vmatprep.subr.bf16.mxu0 0
        %1224 = vmatpush1.bf16.msra.mxu0 %v1201
        %1225 = vmatprep.subr.bf16.mxu0 0
        %1226 = vmatpush1.bf16.msra.mxu0 %v1200
        %1227 = vmatprep.subr.bf16.mxu0 0
        %1228 = vmatpush1.bf16.msra.mxu0 %v1199
        %1229 = vmatprep.subr.bf16.mxu0 0
        %1230 = vmatpush1.bf16.msra.mxu0 %v1198
        %1231 = vmatprep.subr.bf16.mxu0 0
        %1232 = vmatpush1.bf16.msra.mxu0 %v1197
        %1233 = vmatprep.subr.bf16.mxu0 0
        %1234 = vmatpush1.bf16.msra.mxu0 %v1196
        %1235 = vmatprep.subr.bf16.mxu0 0
        %1236 = vmatpush2.bf16.msra.mxu0 %v1211
        %1237 = vmatprep.subr.bf16.mxu0 0
        %1238 = vmatpush2.bf16.msra.mxu0 %v1210
        %1239 = vmatprep.subr.bf16.mxu0 0
        %1240 = vmatpush2.bf16.msra.mxu0 %v1209
        %1241 = vmatprep.subr.bf16.mxu0 0
        %1242 = vmatpush2.bf16.msra.mxu0 %v1208
        %1243 = vmatprep.subr.bf16.mxu0 0
        %1244 = vmatpush2.bf16.msra.mxu0 %v1207
        %1245 = vmatprep.subr.bf16.mxu0 0
        %1246 = vmatpush2.bf16.msra.mxu0 %v1206
        %1247 = vmatprep.subr.bf16.mxu0 0
        %1248 = vmatpush2.bf16.msra.mxu0 %v1205
        %1249 = vmatprep.subr.bf16.mxu0 0
        %1250 = vmatpush2.bf16.msra.mxu0 %v1204
        %1251 = vmatprep.mubr.bf16.mxu0 %v603
        %1252 = vmatmul.mubr.bf16.gmra.mxu0 %v602
        %v1253 = vpop.f32.mrf.mxu0
        %v1254 = vadd.f32 %v1217, %v1253
        %v1255 = vpop.f32.mrf.mxu0
        %v1256 = vpop.f32.mrf.mxu0
        %v1257 = vadd.f32 %v1217, %v1256
        %v1258 = vpop.f32.mrf.mxu0
        %1259 = vmatprep.mubr.bf16.mxu0 %v605
        %1260 = vmatmul.mubr.bf16.gmra.mxu0 %v604
        %v1261 = vpop.f32.mrf.mxu0
        %v1262 = vadd.f32 %v1217, %v1261
        %v1263 = vpop.f32.mrf.mxu0
        %v1264 = vpop.f32.mrf.mxu0
        %v1265 = vadd.f32 %v1217, %v1264
        %v1266 = vpop.f32.mrf.mxu0
        %1267 = vmatprep.mubr.bf16.mxu0 %v607
        %1268 = vmatmul.mubr.bf16.gmra.mxu0 %v606
        %v1269 = vpop.f32.mrf.mxu0
        %v1270 = vadd.f32 %v1217, %v1269
        %v1271 = vpop.f32.mrf.mxu0
        %v1272 = vpop.f32.mrf.mxu0
        %v1273 = vadd.f32 %v1217, %v1272
        %v1274 = vpop.f32.mrf.mxu0
        %1275 = vmatprep.mubr.bf16.mxu0 %v609
        %1276 = vmatmul.mubr.bf16.gmra.mxu0 %v608
        %v1277 = vpop.f32.mrf.mxu0
        %v1278 = vadd.f32 %v1217, %v1277
        %v1279 = vpop.f32.mrf.mxu0
        %v1280 = vpop.f32.mrf.mxu0
        %v1281 = vadd.f32 %v1217, %v1280
        %v1282 = vpop.f32.mrf.mxu0
        %1283 = vmatprep.mubr.bf16.mxu0 %v611
        %1284 = vmatmul.mubr.bf16.gmra.mxu0 %v610
        %v1285 = vpop.f32.mrf.mxu0
        %v1286 = vadd.f32 %v1217, %v1285
        %v1287 = vpop.f32.mrf.mxu0
        %v1288 = vpop.f32.mrf.mxu0
        %v1289 = vadd.f32 %v1217, %v1288
        %v1290 = vpop.f32.mrf.mxu0
        %1291 = vmatprep.mubr.bf16.mxu0 %v613
        %1292 = vmatmul.mubr.bf16.gmra.mxu0 %v612
        %v1293 = vpop.f32.mrf.mxu0
        %v1294 = vadd.f32 %v1217, %v1293
        %v1295 = vpop.f32.mrf.mxu0
        %v1296 = vpop.f32.mrf.mxu0
        %v1297 = vadd.f32 %v1217, %v1296
        %v1298 = vpop.f32.mrf.mxu0
        %1299 = vmatprep.mubr.bf16.mxu0 %v615
        %1300 = vmatmul.mubr.bf16.gmra.mxu0 %v614
        %v1301 = vpop.f32.mrf.mxu0
        %v1302 = vadd.f32 %v1217, %v1301
        %v1303 = vpop.f32.mrf.mxu0
        %v1304 = vpop.f32.mrf.mxu0
        %v1305 = vadd.f32 %v1217, %v1304
        %v1306 = vpop.f32.mrf.mxu0
        %1307 = vmatprep.mubr.bf16.mxu0 %v617
        %1308 = vmatmul.mubr.bf16.gmra.mxu0 %v616
        %v1309 = vpop.f32.mrf.mxu0
        %v1310 = vadd.f32 %v1217, %v1309
        %v1311 = vpop.f32.mrf.mxu0
        %v1312 = vpop.f32.mrf.mxu0
        %v1313 = vadd.f32 %v1217, %v1312
        %v1314 = vpop.f32.mrf.mxu0
        %1315 = vmatprep.mubr.bf16.mxu0 %v619
        %1316 = vmatmul.mubr.bf16.gmra.mxu0 %v618
        %v1317 = vpop.f32.mrf.mxu0
        %v1318 = vadd.f32 %v1217, %v1317
        %v1319 = vpop.f32.mrf.mxu0
        %v1320 = vpop.f32.mrf.mxu0
        %v1321 = vadd.f32 %v1217, %v1320
        %v1322 = vpop.f32.mrf.mxu0
        %1323 = vmatprep.mubr.bf16.mxu0 %v621
        %1324 = vmatmul.mubr.bf16.gmra.mxu0 %v620
        %v1325 = vpop.f32.mrf.mxu0
        %v1326 = vadd.f32 %v1217, %v1325
        %v1327 = vpop.f32.mrf.mxu0
        %v1328 = vpop.f32.mrf.mxu0
        %v1329 = vadd.f32 %v1217, %v1328
        %v1330 = vpop.f32.mrf.mxu0
        %1331 = vmatprep.mubr.bf16.mxu0 %v623
        %1332 = vmatmul.mubr.bf16.gmra.mxu0 %v622
        %v1333 = vpop.f32.mrf.mxu0
        %v1334 = vadd.f32 %v1217, %v1333
        %v1335 = vpop.f32.mrf.mxu0
        %v1336 = vpop.f32.mrf.mxu0
        %v1337 = vadd.f32 %v1217, %v1336
        %v1338 = vpop.f32.mrf.mxu0
        %1339 = vmatprep.mubr.bf16.mxu0 %v625
        %1340 = vmatmul.mubr.bf16.gmra.mxu0 %v624
        %v1341 = vpop.f32.mrf.mxu0
        %v1342 = vadd.f32 %v1217, %v1341
        %v1343 = vpop.f32.mrf.mxu0
        %v1344 = vpop.f32.mrf.mxu0
        %v1345 = vadd.f32 %v1217, %v1344
        %v1346 = vpop.f32.mrf.mxu0
        %1347 = vmatprep.mubr.bf16.mxu0 %v627
        %1348 = vmatmul.mubr.bf16.gmra.mxu0 %v626
        %v1349 = vpop.f32.mrf.mxu0
        %v1350 = vadd.f32 %v1217, %v1349
        %v1351 = vpop.f32.mrf.mxu0
        %v1352 = vpop.f32.mrf.mxu0
        %v1353 = vadd.f32 %v1217, %v1352
        %v1354 = vpop.f32.mrf.mxu0
        %1355 = vmatprep.mubr.bf16.mxu0 %v629
        %1356 = vmatmul.mubr.bf16.gmra.mxu0 %v628
        %v1357 = vpop.f32.mrf.mxu0
        %v1358 = vadd.f32 %v1217, %v1357
        %v1359 = vpop.f32.mrf.mxu0
        %v1360 = vpop.f32.mrf.mxu0
        %v1361 = vadd.f32 %v1217, %v1360
        %v1362 = vpop.f32.mrf.mxu0
        %1363 = vmatprep.mubr.bf16.mxu0 %v631
        %1364 = vmatmul.mubr.bf16.gmra.mxu0 %v630
        %v1365 = vpop.f32.mrf.mxu0
        %v1366 = vadd.f32 %v1217, %v1365
        %v1367 = vpop.f32.mrf.mxu0
        %v1368 = vpop.f32.mrf.mxu0
        %v1369 = vadd.f32 %v1217, %v1368
        %v1370 = vpop.f32.mrf.mxu0
        %1371 = vmatprep.mubr.bf16.mxu0 %v633
        %1372 = vmatmul.mubr.bf16.gmra.mxu0 %v632
        %v1373 = vpop.f32.mrf.mxu0
        %v1374 = vadd.f32 %v1217, %v1373
        %v1375 = vpop.f32.mrf.mxu0
        %v1376 = vpop.f32.mrf.mxu0
        %v1377 = vadd.f32 %v1217, %v1376
        %v1378 = vpop.f32.mrf.mxu0
        %1379 = vdwg.mxu0
        %v1380 = vadd.f32 %v1254, %v1257
        %v1381 = vadd.f32 %v1380, %v1262
        %v1382 = vadd.f32 %v1381, %v1265
        %v1383 = vadd.f32 %v1382, %v1270
        %v1384 = vadd.f32 %v1383, %v1273
        %v1385 = vadd.f32 %v1384, %v1278
        %v1386 = vadd.f32 %v1385, %v1281
        %v1387 = vrot.slane %v1386, 4
        %v1388 = vadd.f32 %v1386, %v1387
        %v1389 = vrot.slane %v1388, 2
        %v1390 = vadd.f32 %v1388, %v1389
        %v1391 = vrot.slane %v1390, 1
        %v1392 = vadd.f32 %v1390, %v1391
        %v1393 = vadd.f32 %v1286, %v1289
        %v1394 = vadd.f32 %v1393, %v1294
        %v1395 = vadd.f32 %v1394, %v1297
        %v1396 = vadd.f32 %v1395, %v1302
        %v1397 = vadd.f32 %v1396, %v1305
        %v1398 = vadd.f32 %v1397, %v1310
        %v1399 = vadd.f32 %v1398, %v1313
        %v1400 = vrot.slane %v1399, 4
        %v1401 = vadd.f32 %v1399, %v1400
        %v1402 = vrot.slane %v1401, 2
        %v1403 = vadd.f32 %v1401, %v1402
        %v1404 = vrot.slane %v1403, 1
        %v1405 = vadd.f32 %v1403, %v1404
        %v1406 = vadd.f32 %v1318, %v1321
        %v1407 = vadd.f32 %v1406, %v1326
        %v1408 = vadd.f32 %v1407, %v1329
        %v1409 = vadd.f32 %v1408, %v1334
        %v1410 = vadd.f32 %v1409, %v1337
        %v1411 = vadd.f32 %v1410, %v1342
        %v1412 = vadd.f32 %v1411, %v1345
        %v1413 = vrot.slane %v1412, 4
        %v1414 = vadd.f32 %v1412, %v1413
        %v1415 = vrot.slane %v1414, 2
        %v1416 = vadd.f32 %v1414, %v1415
        %v1417 = vrot.slane %v1416, 1
        %v1418 = vadd.f32 %v1416, %v1417
        %v1419 = vadd.f32 %v1350, %v1353
        %v1420 = vadd.f32 %v1419, %v1358
        %v1421 = vadd.f32 %v1420, %v1361
        %v1422 = vadd.f32 %v1421, %v1366
        %v1423 = vadd.f32 %v1422, %v1369
        %v1424 = vadd.f32 %v1423, %v1374
        %v1425 = vadd.f32 %v1424, %v1377
        %v1426 = vrot.slane %v1425, 4
        %v1427 = vadd.f32 %v1425, %v1426
        %v1428 = vrot.slane %v1427, 2
        %v1429 = vadd.f32 %v1427, %v1428
        %v1430 = vrot.slane %v1429, 1
        %v1431 = vadd.f32 %v1429, %v1430
        %v1432 = vmul.f32 %v1392, 0.015625
        %v1433 = vmul.f32 %v1405, 0.015625
        %v1434 = vmul.f32 %v1418, 0.015625
        %v1435 = vmul.f32 %v1431, 0.015625
        %v1436 = vpack.c.bf16 %v1432, %v1432
        %v1437 = vpack.c.bf16 %v1433, %v1433
        %v1438 = vpack.c.bf16 %v1434, %v1434
        %v1439 = vpack.c.bf16 %v1435, %v1435
        %v1440 = vld [vmem:[#allocation8] sm:$0xf]
        %v1441 = vld [vmem:[#allocation8 + $0x4] sm:$0xf]
        %v1442 = vld [vmem:[#allocation8 + $0x8] sm:$0xf]
        %v1443 = vld [vmem:[#allocation8 + $0xc] sm:$0xf]
        %v1444 = vld [vmem:[#allocation8 + $0x10] sm:$0xf]
        %v1445 = vld [vmem:[#allocation8 + $0x14] sm:$0xf]
        %v1446 = vld [vmem:[#allocation8 + $0x18] sm:$0xf]
        %v1447 = vld [vmem:[#allocation8 + $0x1c] sm:$0xf]
        %v1448 = vld [vmem:[#allocation8 + $0x20] sm:$0xf]
        %v1449 = vld [vmem:[#allocation8 + $0x24] sm:$0xf]
        %v1450 = vld [vmem:[#allocation8 + $0x28] sm:$0xf]
        %v1451 = vld [vmem:[#allocation8 + $0x2c] sm:$0xf]
        %v1452 = vld [vmem:[#allocation8 + $0x30] sm:$0xf]
        %v1453 = vld [vmem:[#allocation8 + $0x34] sm:$0xf]
        %v1454 = vld [vmem:[#allocation8 + $0x38] sm:$0xf]
        %v1455 = vld [vmem:[#allocation8 + $0x3c] sm:$0xf]
        %v1456 = vld [vmem:[%s6] sm:$0x1]
        %v1458 = vlaneseq
        %v1459 = vshrl.u32 %v1458, 7
        %v1460 = vsub.s32 0, %v1459
        %v1461 = vrot.slane %v1456, %v1460
        %v1467 = vunpack.c.l.b16 %v1436
        %v1468 = vunpack.c.l.b16 %v1437
        %v1469 = vunpack.c.l.b16 %v1438
        %v1470 = vunpack.c.l.b16 %v1439
        %vm1471 = vcmask 1041409
        %v1472 = vsel %vm1471, %v1468, %v1467
        %vm1473 = vcmask 1042434
        %v1474 = vsel %vm1473, %v1469, %v1472
        %vm1475 = vcmask 1043459
        %v1476 = vsel %vm1475, %v1470, %v1474
        %v1477 = vpack.c.b16 %v1476, %v1476
        %v1495 = vunpack.c.l.b16 %v1440
        %v1496 = vunpack.c.l.b16 %v1441
        %v1497 = vunpack.c.l.b16 %v1442
        %v1498 = vunpack.c.l.b16 %v1443
        %v1499 = vunpack.c.l.b16 %v1444
        %v1500 = vunpack.c.l.b16 %v1445
        %v1501 = vunpack.c.l.b16 %v1446
        %v1502 = vunpack.c.l.b16 %v1447
        %v1503 = vunpack.c.l.b16 %v1448
        %v1504 = vunpack.c.l.b16 %v1449
        %v1505 = vunpack.c.l.b16 %v1450
        %v1506 = vunpack.c.l.b16 %v1451
        %v1507 = vunpack.c.l.b16 %v1452
        %v1508 = vunpack.c.l.b16 %v1453
        %v1509 = vunpack.c.l.b16 %v1454
        %v1510 = vunpack.c.l.b16 %v1455
        %v1511 = vpack.c.b16 %v1496, %v1495
        %v1512 = vpack.c.b16 %v1498, %v1497
        %v1513 = vpack.c.b16 %v1500, %v1499
        %v1514 = vpack.c.b16 %v1502, %v1501
        %v1515 = vpack.c.b16 %v1504, %v1503
        %v1516 = vpack.c.b16 %v1506, %v1505
        %v1517 = vpack.c.b16 %v1508, %v1507
        %v1518 = vpack.c.b16 %v1510, %v1509
        %1527 = vmatprep.subr.bf16.mxu0 0
        %1528 = vmatpush1.bf16.msra.mxu0 %v1518
        %1529 = vmatprep.subr.bf16.mxu0 0
        %1530 = vmatpush1.bf16.msra.mxu0 %v1517
        %1531 = vmatprep.subr.bf16.mxu0 0
        %1532 = vmatpush1.bf16.msra.mxu0 %v1516
        %1533 = vmatprep.subr.bf16.mxu0 0
        %1534 = vmatpush1.bf16.msra.mxu0 %v1515
        %1535 = vmatprep.subr.bf16.mxu0 0
        %1536 = vmatpush1.bf16.msra.mxu0 %v1514
        %1537 = vmatprep.subr.bf16.mxu0 0
        %1538 = vmatpush1.bf16.msra.mxu0 %v1513
        %1539 = vmatprep.subr.bf16.mxu0 0
        %1540 = vmatpush1.bf16.msra.mxu0 %v1512
        %1541 = vmatprep.subr.bf16.mxu0 0
        %1542 = vmatpush1.bf16.msra.mxu0 %v1511
        %1543 = vmatprep.subr.bf16.mxu0 0
        %1544 = vmatpush2.bf16.msra.mxu0 0
        %1545 = vmatprep.subr.bf16.mxu0 0
        %1546 = vmatpush2.bf16.msra.mxu0 0
        %1547 = vmatprep.subr.bf16.mxu0 0
        %1548 = vmatpush2.bf16.msra.mxu0 0
        %1549 = vmatprep.subr.bf16.mxu0 0
        %1550 = vmatpush2.bf16.msra.mxu0 0
        %1551 = vmatprep.subr.bf16.mxu0 0
        %1552 = vmatpush2.bf16.msra.mxu0 0
        %1553 = vmatprep.subr.bf16.mxu0 0
        %1554 = vmatpush2.bf16.msra.mxu0 0
        %1555 = vmatprep.subr.bf16.mxu0 0
        %1556 = vmatpush2.bf16.msra.mxu0 0
        %1557 = vmatprep.subr.bf16.mxu0 0
        %1558 = vmatpush2.bf16.msra.mxu0 0
        %1559 = vmatprep.mubr.bf16.mxu0 0
        %1560 = vmatmul.mubr.bf16.gmra.mxu0 %v1477
        %v1561 = vpop.f32.mrf.mxu0
        %v1562 = vadd.f32 %v1461, %v1561
        %v1563 = vpop.f32.mrf.mxu0
        %v1564 = vpop.f32.mrf.mxu0
        %v1565 = vpop.f32.mrf.mxu0
        %1566 = vdwg.mxu0
        %v1567 = vmax.f32 %v1562, 0.0
        %v1568 = vpack.c.bf16 %v1567, %v1567
        %v1569 = vld [vmem:[#allocation10] sm:$0xf]
        %v1570 = vld [vmem:[#allocation10 + $0x4] sm:$0xf]
        %v1571 = vld [vmem:[#allocation10 + $0x8] sm:$0xf]
        %v1572 = vld [vmem:[#allocation10 + $0xc] sm:$0xf]
        %v1573 = vld [vmem:[#allocation10 + $0x10] sm:$0xf]
        %v1574 = vld [vmem:[#allocation10 + $0x14] sm:$0xf]
        %v1575 = vld [vmem:[#allocation10 + $0x18] sm:$0xf]
        %v1576 = vld [vmem:[#allocation10 + $0x1c] sm:$0xf]
        %v1577 = vld [vmem:[#allocation10 + $0x20] sm:$0xf]
        %v1578 = vld [vmem:[#allocation10 + $0x24] sm:$0xf]
        %v1579 = vld [vmem:[#allocation10 + $0x28] sm:$0xf]
        %v1580 = vld [vmem:[#allocation10 + $0x2c] sm:$0xf]
        %v1581 = vld [vmem:[#allocation10 + $0x30] sm:$0xf]
        %v1582 = vld [vmem:[#allocation10 + $0x34] sm:$0xf]
        %v1583 = vld [vmem:[#allocation10 + $0x38] sm:$0xf]
        %v1584 = vld [vmem:[#allocation10 + $0x3c] sm:$0xf]
        %v1585 = vld [vmem:[%s8] sm:$0x1]
        %v1587 = vlaneseq
        %v1588 = vshrl.u32 %v1587, 7
        %v1589 = vsub.s32 0, %v1588
        %v1590 = vrot.slane %v1585, %v1589
        %v1608 = vunpack.c.l.b16 %v1569
        %v1609 = vunpack.c.l.b16 %v1570
        %v1610 = vunpack.c.l.b16 %v1571
        %v1611 = vunpack.c.l.b16 %v1572
        %v1612 = vunpack.c.l.b16 %v1573
        %v1613 = vunpack.c.l.b16 %v1574
        %v1614 = vunpack.c.l.b16 %v1575
        %v1615 = vunpack.c.l.b16 %v1576
        %v1616 = vunpack.c.l.b16 %v1577
        %v1617 = vunpack.c.l.b16 %v1578
        %v1618 = vunpack.c.l.b16 %v1579
        %v1619 = vunpack.c.l.b16 %v1580
        %v1620 = vunpack.c.l.b16 %v1581
        %v1621 = vunpack.c.l.b16 %v1582
        %v1622 = vunpack.c.l.b16 %v1583
        %v1623 = vunpack.c.l.b16 %v1584
        %v1624 = vpack.c.b16 %v1609, %v1608
        %v1625 = vpack.c.b16 %v1611, %v1610
        %v1626 = vpack.c.b16 %v1613, %v1612
        %v1627 = vpack.c.b16 %v1615, %v1614
        %v1628 = vpack.c.b16 %v1617, %v1616
        %v1629 = vpack.c.b16 %v1619, %v1618
        %v1630 = vpack.c.b16 %v1621, %v1620
        %v1631 = vpack.c.b16 %v1623, %v1622
        %1640 = vmatprep.subr.bf16.mxu0 0
        %1641 = vmatpush1.bf16.msra.mxu0 %v1631
        %1642 = vmatprep.subr.bf16.mxu0 0
        %1643 = vmatpush1.bf16.msra.mxu0 %v1630
        %1644 = vmatprep.subr.bf16.mxu0 0
        %1645 = vmatpush1.bf16.msra.mxu0 %v1629
        %1646 = vmatprep.subr.bf16.mxu0 0
        %1647 = vmatpush1.bf16.msra.mxu0 %v1628
        %1648 = vmatprep.subr.bf16.mxu0 0
        %1649 = vmatpush1.bf16.msra.mxu0 %v1627
        %1650 = vmatprep.subr.bf16.mxu0 0
        %1651 = vmatpush1.bf16.msra.mxu0 %v1626
        %1652 = vmatprep.subr.bf16.mxu0 0
        %1653 = vmatpush1.bf16.msra.mxu0 %v1625
        %1654 = vmatprep.subr.bf16.mxu0 0
        %1655 = vmatpush1.bf16.msra.mxu0 %v1624
        %1656 = vmatprep.subr.bf16.mxu0 0
        %1657 = vmatpush2.bf16.msra.mxu0 0
        %1658 = vmatprep.subr.bf16.mxu0 0
        %1659 = vmatpush2.bf16.msra.mxu0 0
        %1660 = vmatprep.subr.bf16.mxu0 0
        %1661 = vmatpush2.bf16.msra.mxu0 0
        %1662 = vmatprep.subr.bf16.mxu0 0
        %1663 = vmatpush2.bf16.msra.mxu0 0
        %1664 = vmatprep.subr.bf16.mxu0 0
        %1665 = vmatpush2.bf16.msra.mxu0 0
        %1666 = vmatprep.subr.bf16.mxu0 0
        %1667 = vmatpush2.bf16.msra.mxu0 0
        %1668 = vmatprep.subr.bf16.mxu0 0
        %1669 = vmatpush2.bf16.msra.mxu0 0
        %1670 = vmatprep.subr.bf16.mxu0 0
        %1671 = vmatpush2.bf16.msra.mxu0 0
        %1672 = vmatprep.mubr.bf16.mxu0 0
        %1673 = vmatmul.mubr.bf16.gmra.mxu0 %v1568
        %v1674 = vpop.f32.mrf.mxu0
        %v1675 = vadd.f32 %v1590, %v1674
        %v1676 = vpop.f32.mrf.mxu0
        %v1677 = vpop.f32.mrf.mxu0
        %v1678 = vpop.f32.mrf.mxu0
        %1679 = vdwg.mxu0
        %1680 = vst [vmem:[%s433] sm:$0xf] %v1675
        %s1681 = sand.u32 %s237, 1
        %s1682 = scalar_lea.sflag [#allocation4], %s1681
        %s1683 = sand.u32 %s237, 1
        %s1684 = smul.addr %s1683, 4
        %s1685 = scalar_lea.vmem [#allocation11], %s1684
        // Predicated region
        $region77: #{tpu_custom_call.1} parent=55 // pred_check
          %p1686 = pneg %p247
        $region78: #{tpu_custom_call.1} parent=55 // pred_check_branch
          %1688 = sbr.rel (%p1686) target = $region80
        $region79: #{tpu_custom_call.1} parent=55 // pred_region
          %s1690 = ssub.s32 64, 64
          %1691 = vsyncadd %s1682, %s1690
          %s1692 = smul.addr %s30, 64
          %s1693 = scalar_lea.hbm %s9, %s1692
          %s1695 = sshll.u32 %s1685, 4
          %s1696 = int_to_ptr.vmem [resolvable:$true] %s1695
          %1698 = dma.vmem_to_hbm [thread:$0]  %s1696, 64, %s1693, %s1682
        $region80: #{tpu_custom_call.1} parent=55 // pred_fallthru
          _
      $region56: #{tpu_custom_call.1} parent=5 // pred_fallthru
        _
      %p1699 = scmp.le.s32.totalorder 2, %s25
      // Predicated region
      $region81: #{tpu_custom_call.1} parent=5 // pred_check
        %p1700 = pneg %p1699
      $region82: #{tpu_custom_call.1} parent=5 // pred_check_branch
        %1702 = sbr.rel (%p1700) target = $region84
      $region83: #{tpu_custom_call.1} parent=5 // pred_region
        %s1703 = ssub.s32 %s25, 2
        // Predicated region
        $region85: #{tpu_custom_call.1} parent=83 // pred_check
          %p1704 = pneg %p253
        $region86: #{tpu_custom_call.1} parent=83 // pred_check_branch
          %1706 = sbr.rel (%p1704) target = $region88
        $region87: #{tpu_custom_call.1} parent=83 // pred_region
          %s1707 = sand.u32 %s238, 1
          %s1708 = scalar_lea.sflag [#allocation4], %s1707
          %s1709 = sand.u32 %s238, 1
          %s1710 = smul.addr %s1709, 4
          %s1711 = scalar_lea.vmem [#allocation11], %s1710
          %1712 = dma.done %s1708, 64
        $region88: #{tpu_custom_call.1} parent=83 // pred_fallthru
          _
      $region84: #{tpu_custom_call.1} parent=5 // pred_fallthru
        _
    $region6: #{tpu_custom_call.1} parent=1 // loop_footer
      %s29 = sadd.s32 1, %s25
    $region7: #{tpu_custom_call.1} parent=1 // loop_footer_branch
      %24 = sbr.rel target = $region3
    $region8: #{tpu_custom_call.1} parent=1 // loop_exit
      _
    %1713 = vsyncpa [#allocation3], 1
    %s1714 = scalar_lea.sflag [#allocation3], 1
    %1715 = vsyncpa %s1714, 1
    %1716 = vsyncpa [#allocation6], 1
    %s1717 = scalar_lea.sflag [#allocation6], 1
    %1718 = vsyncpa %s1717, 1
    %1719 = vsyncpa [#allocation9], 1
    %1720 = vsyncpa [#allocation4], 1
    %s1721 = scalar_lea.sflag [#allocation4], 1
    %1722 = vsyncpa %s1721, 1

</llo_original>
